<compile_context>
chip_gen: v7x
topology: tpu7x:2x2x1
jax: 0.10.0
libtpu: 0.0.40
codegen_flags: <defaults>
</compile_context>

<pallas_src>
import functools

import jax
import jax.numpy as jnp
from jax.experimental import pallas as pl
from jax.experimental.pallas import tpu as pltpu


def _resnet_block_kernel(x_ref, w1_ref, b1_ref, w2_ref, b2_ref, mask_ref, o_ref,
                         *, H, W):
    """Per grid step (one image):
       x_ref/o_ref: (C, H*W) f32 lane-dense activation block
       wN_ref: (9, C, C) bf16 tap weights (BN scale folded), tap k = dy*3+dx
       bN_ref: (C, 1) f32 folded BN bias
       mask_ref: (9, H*W) f32 0/1 boundary masks (SAME zero padding)."""
    HW = H * W

    def conv3x3(a, w_ref):
        # a: (C, HW) f32.  Per-tap accumulated MXU matmuls (no im2col scratch).
        acc = None
        for dy in range(3):
            for dx in range(3):
                k = dy * 3 + dx
                off = (dy - 1) * W + (dx - 1)
                # s[c, p] = a[c, p + off]; wraparound from the roll only lands
                # on positions zeroed by the boundary mask below.
                s = a if off == 0 else pltpu.roll(a, (-off) % HW, axis=1)
                s = s * mask_ref[k:k + 1, :]                 # zero out-of-image taps
                t = jnp.dot(w_ref[k], s.astype(jnp.bfloat16),
                            preferred_element_type=jnp.float32)
                acc = t if acc is None else acc + t
        return acc

    x = x_ref[...].astype(jnp.float32)

    # conv1 (BN1 scale folded into weights) -> bias add -> ReLU
    h = jnp.maximum(conv3x3(x, w1_ref) + b1_ref[...], 0.0)
    # conv2 (BN2 scale folded) -> bias add
    h = conv3x3(h, w2_ref) + b2_ref[...]
    # residual add + final ReLU; one lane-dense full-block store.
    o_ref[...] = jnp.maximum(x + h, 0.0).astype(o_ref.dtype)


def resnet_block(x, w1, w2, bn1, bn2, eps=1e-5):
    """x: (N, C, H, W) f32; w1/w2: (C, C, 3, 3) f32 (PyTorch OIHW, bias=False);
    bn1/bn2 = (gamma, beta, running_mean, running_var), each (C,)."""
    N, C, H, W = x.shape
    HW = H * W

    def fold(w, bn):
        gamma, beta, mean, var = bn
        scale = gamma / jnp.sqrt(var + eps)          # (C,)
        bias = beta - mean * scale                   # (C,)
        # (O, I, 3, 3) -> (9, O, I) with tap k = dy*3 + dx; fold BN scale into
        # the output-channel rows; cast to bf16 for the MXU.
        wt = jnp.transpose(w, (2, 3, 0, 1)).reshape(9, C, C)
        wt = wt * scale[None, :, None]
        return wt.astype(jnp.bfloat16), bias.reshape(C, 1).astype(jnp.float32)

    w1m, b1 = fold(w1, bn1)
    w2m, b2 = fold(w2, bn2)

    # Per-tap boundary masks for SAME zero padding, built once host-side on a
    # (9, HW) slab; shared by both convs and every grid step.
    hh = jnp.arange(HW, dtype=jnp.int32) // W
    ww = jnp.arange(HW, dtype=jnp.int32) % W
    rows = []
    for dy in range(3):
        for dx in range(3):
            oy, ox = dy - 1, dx - 1
            valid = ((hh + oy >= 0) & (hh + oy <= H - 1) &
                     (ww + ox >= 0) & (ww + ox <= W - 1))
            rows.append(valid.astype(jnp.float32))
    mask = jnp.stack(rows, axis=0)                   # (9, HW)

    # Free reshape (contiguous, no HBM transpose): NCHW -> (N, C, H*W).
    x3 = x.reshape(N, C, HW)

    kernel = functools.partial(_resnet_block_kernel, H=H, W=W)
    resident2 = lambda n: (0, 0)        # params resident across grid steps
    resident3 = lambda n: (0, 0, 0)

    out = pl.pallas_call(
        kernel,
        out_shape=jax.ShapeDtypeStruct((N, C, HW), x.dtype),
        grid=(N,),
        in_specs=[
            pl.BlockSpec((None, C, HW), lambda n: (n, 0, 0)),   # x: per-image block
            pl.BlockSpec((9, C, C), resident3),                 # w1 (bf16, BN folded)
            pl.BlockSpec((C, 1), resident2),                    # b1
            pl.BlockSpec((9, C, C), resident3),                 # w2
            pl.BlockSpec((C, 1), resident2),                    # b2
            pl.BlockSpec((9, HW), resident2),                   # boundary masks
        ],
        out_specs=pl.BlockSpec((None, C, HW), lambda n: (n, 0, 0)),
        compiler_params=pltpu.CompilerParams(
            dimension_semantics=("parallel",)),
    )(x3, w1m, b1, w2m, b2, mask)

    return out.reshape(N, C, H, W)


def resnet_block_ref(x, w1, w2, bn1, bn2, eps=1e-5):
    """Pure-JAX reference of the PyTorch forward (inference-mode BN)."""
    def conv(a, w):
        return jax.lax.conv_general_dilated(
            a, w, window_strides=(1, 1), padding="SAME",
            dimension_numbers=("NCHW", "OIHW", "NCHW"),
            precision=jax.lax.Precision.HIGHEST)

    def bn(a, p):
        gamma, beta, mean, var = p
        s = gamma / jnp.sqrt(var + eps)
        b = beta - mean * s
        return a * s[None, :, None, None] + b[None, :, None, None]

    h = jax.nn.relu(bn(conv(x, w1), bn1))
    h = bn(conv(h, w2), bn2)
    return jax.nn.relu(x + h)


if __name__ == "__main__":
    key = jax.random.PRNGKey(0)
    (kx, kw1, kw2, kg1, kb1, km1, kv1, kg2, kb2, km2, kv2) = jax.random.split(key, 11)

    # planes=4, expansion=1, kernel_size=3, zero padding, BatchNorm2d, ReLU
    N, C, H, W = 2, 4, 16, 16
    x = jax.random.normal(kx, (N, C, H, W), jnp.float32)
    w1 = 0.2 * jax.random.normal(kw1, (C, C, 3, 3), jnp.float32)
    w2 = 0.2 * jax.random.normal(kw2, (C, C, 3, 3), jnp.float32)
    bn1 = (1.0 + 0.1 * jax.random.normal(kg1, (C,), jnp.float32),
           0.1 * jax.random.normal(kb1, (C,), jnp.float32),
           0.1 * jax.random.normal(km1, (C,), jnp.float32),
           0.5 + jnp.abs(jax.random.normal(kv1, (C,), jnp.float32)))
    bn2 = (1.0 + 0.1 * jax.random.normal(kg2, (C,), jnp.float32),
           0.1 * jax.random.normal(kb2, (C,), jnp.float32),
           0.1 * jax.random.normal(km2, (C,), jnp.float32),
           0.5 + jnp.abs(jax.random.normal(kv2, (C,), jnp.float32)))

    out = resnet_block(x, w1, w2, bn1, bn2)
    out = jax.block_until_ready(out)

    ref = resnet_block_ref(x, w1, w2, bn1, bn2)
    assert out.shape == (N, C, H, W)
    # bf16 MXU operands vs f32 reference -> slightly relaxed tolerance.
    assert jnp.allclose(out, ref, atol=5e-2, rtol=5e-2), (
        float(jnp.max(jnp.abs(out - ref))))
    print("KERNEL_OK")
</pallas_src>

<mosaic_0001>
module attributes {stable_mosaic.version = 11 : i64} {
  func.func @_resnet_block_kernel(%arg0: i32, %arg1: memref<1x4x256xf32, #tpu.memory_space<vmem>>, %arg2: memref<9x4x4xbf16, #tpu.memory_space<vmem>>, %arg3: memref<4x1xf32, #tpu.memory_space<vmem>>, %arg4: memref<9x4x4xbf16, #tpu.memory_space<vmem>>, %arg5: memref<4x1xf32, #tpu.memory_space<vmem>>, %arg6: memref<9x256xf32, #tpu.memory_space<vmem>>, %arg7: memref<1x4x256xf32, #tpu.memory_space<vmem>>) attributes {dimension_semantics = [#tpu.dimension_semantics<parallel>], iteration_bounds = array<i64: 2>, scalar_prefetch = 0 : i64, scratch_operands = 0 : i64, tpu.core_type = #tpu.core_type<tc>, window_params = [{transform_indices = @transform_0, window_bounds = array<i64: 1, 4, 256>}, {pipeline_mode = #tpu.pipeline_mode<synchronous>, transform_indices = @transform_1, window_bounds = array<i64: 9, 4, 4>}, {pipeline_mode = #tpu.pipeline_mode<synchronous>, transform_indices = @transform_2, window_bounds = array<i64: 4, 1>}, {pipeline_mode = #tpu.pipeline_mode<synchronous>, transform_indices = @transform_3, window_bounds = array<i64: 9, 4, 4>}, {pipeline_mode = #tpu.pipeline_mode<synchronous>, transform_indices = @transform_4, window_bounds = array<i64: 4, 1>}, {pipeline_mode = #tpu.pipeline_mode<synchronous>, transform_indices = @transform_5, window_bounds = array<i64: 9, 256>}, {transform_indices = @transform_6, window_bounds = array<i64: 1, 4, 256>}]} {
    %c0 = arith.constant 0 : index
    %c0_0 = arith.constant 0 : index
    %c0_1 = arith.constant 0 : index
    %0 = vector.load %arg1[%c0, %c0_0, %c0_1] : memref<1x4x256xf32, #tpu.memory_space<vmem>>, vector<1x4x256xf32>
    %1 = vector.shape_cast %0 : vector<1x4x256xf32> to vector<4x256xf32>
    %c17_i32 = arith.constant 17 : i32
    %2 = tpu.dynamic_rotate %1 by %c17_i32 dim 1 : vector<4x256xf32>, i32 -> vector<4x256xf32>
    %c0_2 = arith.constant 0 : index
    %c0_3 = arith.constant 0 : index
    %3 = vector.load %arg6[%c0_2, %c0_3] : memref<9x256xf32, #tpu.memory_space<vmem>>, vector<1x256xf32>
    %4 = vector.broadcast %3 : vector<1x256xf32> to vector<4x256xf32>
    %5 = arith.mulf %2, %4 : vector<4x256xf32>
    %c0_4 = arith.constant 0 : index
    %c0_5 = arith.constant 0 : index
    %c0_6 = arith.constant 0 : index
    %6 = vector.load %arg2[%c0_4, %c0_5, %c0_6] : memref<9x4x4xbf16, #tpu.memory_space<vmem>>, vector<1x4x4xbf16>
    %7 = vector.shape_cast %6 : vector<1x4x4xbf16> to vector<4x4xbf16>
    %8 = arith.truncf %5 : vector<4x256xf32> to vector<4x256xbf16>
    %cst = arith.constant dense<0.000000e+00> : vector<4x256xf32>
    %9 = tpu.matmul %7, %8, %cst {dimension_numbers = #tpu.dot_dimension_numbers<[1], [0], [0], [1], [0, 0, 1, 1], [], []>} : vector<4x4xbf16>, vector<4x256xbf16>, vector<4x256xf32> -> vector<4x256xf32>
    %c16_i32 = arith.constant 16 : i32
    %10 = tpu.dynamic_rotate %1 by %c16_i32 dim 1 : vector<4x256xf32>, i32 -> vector<4x256xf32>
    %c1 = arith.constant 1 : index
    %c0_7 = arith.constant 0 : index
    %11 = vector.load %arg6[%c1, %c0_7] : memref<9x256xf32, #tpu.memory_space<vmem>>, vector<1x256xf32>
    %12 = vector.broadcast %11 : vector<1x256xf32> to vector<4x256xf32>
    %13 = arith.mulf %10, %12 : vector<4x256xf32>
    %c1_8 = arith.constant 1 : index
    %c0_9 = arith.constant 0 : index
    %c0_10 = arith.constant 0 : index
    %14 = vector.load %arg2[%c1_8, %c0_9, %c0_10] : memref<9x4x4xbf16, #tpu.memory_space<vmem>>, vector<1x4x4xbf16>
    %15 = vector.shape_cast %14 : vector<1x4x4xbf16> to vector<4x4xbf16>
    %16 = arith.truncf %13 : vector<4x256xf32> to vector<4x256xbf16>
    %cst_11 = arith.constant dense<0.000000e+00> : vector<4x256xf32>
    %17 = tpu.matmul %15, %16, %cst_11 {dimension_numbers = #tpu.dot_dimension_numbers<[1], [0], [0], [1], [0, 0, 1, 1], [], []>} : vector<4x4xbf16>, vector<4x256xbf16>, vector<4x256xf32> -> vector<4x256xf32>
    %18 = arith.addf %9, %17 : vector<4x256xf32>
    %c15_i32 = arith.constant 15 : i32
    %19 = tpu.dynamic_rotate %1 by %c15_i32 dim 1 : vector<4x256xf32>, i32 -> vector<4x256xf32>
    %c2 = arith.constant 2 : index
    %c0_12 = arith.constant 0 : index
    %20 = vector.load %arg6[%c2, %c0_12] : memref<9x256xf32, #tpu.memory_space<vmem>>, vector<1x256xf32>
    %21 = vector.broadcast %20 : vector<1x256xf32> to vector<4x256xf32>
    %22 = arith.mulf %19, %21 : vector<4x256xf32>
    %c2_13 = arith.constant 2 : index
    %c0_14 = arith.constant 0 : index
    %c0_15 = arith.constant 0 : index
    %23 = vector.load %arg2[%c2_13, %c0_14, %c0_15] : memref<9x4x4xbf16, #tpu.memory_space<vmem>>, vector<1x4x4xbf16>
    %24 = vector.shape_cast %23 : vector<1x4x4xbf16> to vector<4x4xbf16>
    %25 = arith.truncf %22 : vector<4x256xf32> to vector<4x256xbf16>
    %cst_16 = arith.constant dense<0.000000e+00> : vector<4x256xf32>
    %26 = tpu.matmul %24, %25, %cst_16 {dimension_numbers = #tpu.dot_dimension_numbers<[1], [0], [0], [1], [0, 0, 1, 1], [], []>} : vector<4x4xbf16>, vector<4x256xbf16>, vector<4x256xf32> -> vector<4x256xf32>
    %27 = arith.addf %18, %26 : vector<4x256xf32>
    %c1_i32 = arith.constant 1 : i32
    %28 = tpu.dynamic_rotate %1 by %c1_i32 dim 1 : vector<4x256xf32>, i32 -> vector<4x256xf32>
    %c3 = arith.constant 3 : index
    %c0_17 = arith.constant 0 : index
    %29 = vector.load %arg6[%c3, %c0_17] : memref<9x256xf32, #tpu.memory_space<vmem>>, vector<1x256xf32>
    %30 = vector.broadcast %29 : vector<1x256xf32> to vector<4x256xf32>
    %31 = arith.mulf %28, %30 : vector<4x256xf32>
    %c3_18 = arith.constant 3 : index
    %c0_19 = arith.constant 0 : index
    %c0_20 = arith.constant 0 : index
    %32 = vector.load %arg2[%c3_18, %c0_19, %c0_20] : memref<9x4x4xbf16, #tpu.memory_space<vmem>>, vector<1x4x4xbf16>
    %33 = vector.shape_cast %32 : vector<1x4x4xbf16> to vector<4x4xbf16>
    %34 = arith.truncf %31 : vector<4x256xf32> to vector<4x256xbf16>
    %cst_21 = arith.constant dense<0.000000e+00> : vector<4x256xf32>
    %35 = tpu.matmul %33, %34, %cst_21 {dimension_numbers = #tpu.dot_dimension_numbers<[1], [0], [0], [1], [0, 0, 1, 1], [], []>} : vector<4x4xbf16>, vector<4x256xbf16>, vector<4x256xf32> -> vector<4x256xf32>
    %36 = arith.addf %27, %35 : vector<4x256xf32>
    %c4 = arith.constant 4 : index
    %c0_22 = arith.constant 0 : index
    %37 = vector.load %arg6[%c4, %c0_22] : memref<9x256xf32, #tpu.memory_space<vmem>>, vector<1x256xf32>
    %38 = vector.broadcast %37 : vector<1x256xf32> to vector<4x256xf32>
    %39 = arith.mulf %1, %38 : vector<4x256xf32>
    %c4_23 = arith.constant 4 : index
    %c0_24 = arith.constant 0 : index
    %c0_25 = arith.constant 0 : index
    %40 = vector.load %arg2[%c4_23, %c0_24, %c0_25] : memref<9x4x4xbf16, #tpu.memory_space<vmem>>, vector<1x4x4xbf16>
    %41 = vector.shape_cast %40 : vector<1x4x4xbf16> to vector<4x4xbf16>
    %42 = arith.truncf %39 : vector<4x256xf32> to vector<4x256xbf16>
    %cst_26 = arith.constant dense<0.000000e+00> : vector<4x256xf32>
    %43 = tpu.matmul %41, %42, %cst_26 {dimension_numbers = #tpu.dot_dimension_numbers<[1], [0], [0], [1], [0, 0, 1, 1], [], []>} : vector<4x4xbf16>, vector<4x256xbf16>, vector<4x256xf32> -> vector<4x256xf32>
    %44 = arith.addf %36, %43 : vector<4x256xf32>
    %c255_i32 = arith.constant 255 : i32
    %45 = tpu.dynamic_rotate %1 by %c255_i32 dim 1 : vector<4x256xf32>, i32 -> vector<4x256xf32>
    %c5 = arith.constant 5 : index
    %c0_27 = arith.constant 0 : index
    %46 = vector.load %arg6[%c5, %c0_27] : memref<9x256xf32, #tpu.memory_space<vmem>>, vector<1x256xf32>
    %47 = vector.broadcast %46 : vector<1x256xf32> to vector<4x256xf32>
    %48 = arith.mulf %45, %47 : vector<4x256xf32>
    %c5_28 = arith.constant 5 : index
    %c0_29 = arith.constant 0 : index
    %c0_30 = arith.constant 0 : index
    %49 = vector.load %arg2[%c5_28, %c0_29, %c0_30] : memref<9x4x4xbf16, #tpu.memory_space<vmem>>, vector<1x4x4xbf16>
    %50 = vector.shape_cast %49 : vector<1x4x4xbf16> to vector<4x4xbf16>
    %51 = arith.truncf %48 : vector<4x256xf32> to vector<4x256xbf16>
    %cst_31 = arith.constant dense<0.000000e+00> : vector<4x256xf32>
    %52 = tpu.matmul %50, %51, %cst_31 {dimension_numbers = #tpu.dot_dimension_numbers<[1], [0], [0], [1], [0, 0, 1, 1], [], []>} : vector<4x4xbf16>, vector<4x256xbf16>, vector<4x256xf32> -> vector<4x256xf32>
    %53 = arith.addf %44, %52 : vector<4x256xf32>
    %c241_i32 = arith.constant 241 : i32
    %54 = tpu.dynamic_rotate %1 by %c241_i32 dim 1 : vector<4x256xf32>, i32 -> vector<4x256xf32>
    %c6 = arith.constant 6 : index
    %c0_32 = arith.constant 0 : index
    %55 = vector.load %arg6[%c6, %c0_32] : memref<9x256xf32, #tpu.memory_space<vmem>>, vector<1x256xf32>
    %56 = vector.broadcast %55 : vector<1x256xf32> to vector<4x256xf32>
    %57 = arith.mulf %54, %56 : vector<4x256xf32>
    %c6_33 = arith.constant 6 : index
    %c0_34 = arith.constant 0 : index
    %c0_35 = arith.constant 0 : index
    %58 = vector.load %arg2[%c6_33, %c0_34, %c0_35] : memref<9x4x4xbf16, #tpu.memory_space<vmem>>, vector<1x4x4xbf16>
    %59 = vector.shape_cast %58 : vector<1x4x4xbf16> to vector<4x4xbf16>
    %60 = arith.truncf %57 : vector<4x256xf32> to vector<4x256xbf16>
    %cst_36 = arith.constant dense<0.000000e+00> : vector<4x256xf32>
    %61 = tpu.matmul %59, %60, %cst_36 {dimension_numbers = #tpu.dot_dimension_numbers<[1], [0], [0], [1], [0, 0, 1, 1], [], []>} : vector<4x4xbf16>, vector<4x256xbf16>, vector<4x256xf32> -> vector<4x256xf32>
    %62 = arith.addf %53, %61 : vector<4x256xf32>
    %c240_i32 = arith.constant 240 : i32
    %63 = tpu.dynamic_rotate %1 by %c240_i32 dim 1 : vector<4x256xf32>, i32 -> vector<4x256xf32>
    %c7 = arith.constant 7 : index
    %c0_37 = arith.constant 0 : index
    %64 = vector.load %arg6[%c7, %c0_37] : memref<9x256xf32, #tpu.memory_space<vmem>>, vector<1x256xf32>
    %65 = vector.broadcast %64 : vector<1x256xf32> to vector<4x256xf32>
    %66 = arith.mulf %63, %65 : vector<4x256xf32>
    %c7_38 = arith.constant 7 : index
    %c0_39 = arith.constant 0 : index
    %c0_40 = arith.constant 0 : index
    %67 = vector.load %arg2[%c7_38, %c0_39, %c0_40] : memref<9x4x4xbf16, #tpu.memory_space<vmem>>, vector<1x4x4xbf16>
    %68 = vector.shape_cast %67 : vector<1x4x4xbf16> to vector<4x4xbf16>
    %69 = arith.truncf %66 : vector<4x256xf32> to vector<4x256xbf16>
    %cst_41 = arith.constant dense<0.000000e+00> : vector<4x256xf32>
    %70 = tpu.matmul %68, %69, %cst_41 {dimension_numbers = #tpu.dot_dimension_numbers<[1], [0], [0], [1], [0, 0, 1, 1], [], []>} : vector<4x4xbf16>, vector<4x256xbf16>, vector<4x256xf32> -> vector<4x256xf32>
    %71 = arith.addf %62, %70 : vector<4x256xf32>
    %c239_i32 = arith.constant 239 : i32
    %72 = tpu.dynamic_rotate %1 by %c239_i32 dim 1 : vector<4x256xf32>, i32 -> vector<4x256xf32>
    %c8 = arith.constant 8 : index
    %c0_42 = arith.constant 0 : index
    %73 = vector.load %arg6[%c8, %c0_42] : memref<9x256xf32, #tpu.memory_space<vmem>>, vector<1x256xf32>
    %74 = vector.broadcast %73 : vector<1x256xf32> to vector<4x256xf32>
    %75 = arith.mulf %72, %74 : vector<4x256xf32>
    %c8_43 = arith.constant 8 : index
    %c0_44 = arith.constant 0 : index
    %c0_45 = arith.constant 0 : index
    %76 = vector.load %arg2[%c8_43, %c0_44, %c0_45] : memref<9x4x4xbf16, #tpu.memory_space<vmem>>, vector<1x4x4xbf16>
    %77 = vector.shape_cast %76 : vector<1x4x4xbf16> to vector<4x4xbf16>
    %78 = arith.truncf %75 : vector<4x256xf32> to vector<4x256xbf16>
    %cst_46 = arith.constant dense<0.000000e+00> : vector<4x256xf32>
    %79 = tpu.matmul %77, %78, %cst_46 {dimension_numbers = #tpu.dot_dimension_numbers<[1], [0], [0], [1], [0, 0, 1, 1], [], []>} : vector<4x4xbf16>, vector<4x256xbf16>, vector<4x256xf32> -> vector<4x256xf32>
    %80 = arith.addf %71, %79 : vector<4x256xf32>
    %c0_47 = arith.constant 0 : index
    %c0_48 = arith.constant 0 : index
    %81 = vector.load %arg3[%c0_47, %c0_48] : memref<4x1xf32, #tpu.memory_space<vmem>>, vector<4x1xf32>
    %82 = vector.broadcast %81 : vector<4x1xf32> to vector<4x256xf32>
    %83 = arith.addf %80, %82 : vector<4x256xf32>
    %cst_49 = arith.constant 0.000000e+00 : f32
    %84 = vector.broadcast %cst_49 : f32 to vector<4x256xf32>
    %85 = arith.maximumf %83, %84 : vector<4x256xf32>
    %c17_i32_50 = arith.constant 17 : i32
    %86 = tpu.dynamic_rotate %85 by %c17_i32_50 dim 1 : vector<4x256xf32>, i32 -> vector<4x256xf32>
    %c0_51 = arith.constant 0 : index
    %c0_52 = arith.constant 0 : index
    %87 = vector.load %arg6[%c0_51, %c0_52] : memref<9x256xf32, #tpu.memory_space<vmem>>, vector<1x256xf32>
    %88 = vector.broadcast %87 : vector<1x256xf32> to vector<4x256xf32>
    %89 = arith.mulf %86, %88 : vector<4x256xf32>
    %c0_53 = arith.constant 0 : index
    %c0_54 = arith.constant 0 : index
    %c0_55 = arith.constant 0 : index
    %90 = vector.load %arg4[%c0_53, %c0_54, %c0_55] : memref<9x4x4xbf16, #tpu.memory_space<vmem>>, vector<1x4x4xbf16>
    %91 = vector.shape_cast %90 : vector<1x4x4xbf16> to vector<4x4xbf16>
    %92 = arith.truncf %89 : vector<4x256xf32> to vector<4x256xbf16>
    %cst_56 = arith.constant dense<0.000000e+00> : vector<4x256xf32>
    %93 = tpu.matmul %91, %92, %cst_56 {dimension_numbers = #tpu.dot_dimension_numbers<[1], [0], [0], [1], [0, 0, 1, 1], [], []>} : vector<4x4xbf16>, vector<4x256xbf16>, vector<4x256xf32> -> vector<4x256xf32>
    %c16_i32_57 = arith.constant 16 : i32
    %94 = tpu.dynamic_rotate %85 by %c16_i32_57 dim 1 : vector<4x256xf32>, i32 -> vector<4x256xf32>
    %c1_58 = arith.constant 1 : index
    %c0_59 = arith.constant 0 : index
    %95 = vector.load %arg6[%c1_58, %c0_59] : memref<9x256xf32, #tpu.memory_space<vmem>>, vector<1x256xf32>
    %96 = vector.broadcast %95 : vector<1x256xf32> to vector<4x256xf32>
    %97 = arith.mulf %94, %96 : vector<4x256xf32>
    %c1_60 = arith.constant 1 : index
    %c0_61 = arith.constant 0 : index
    %c0_62 = arith.constant 0 : index
    %98 = vector.load %arg4[%c1_60, %c0_61, %c0_62] : memref<9x4x4xbf16, #tpu.memory_space<vmem>>, vector<1x4x4xbf16>
    %99 = vector.shape_cast %98 : vector<1x4x4xbf16> to vector<4x4xbf16>
    %100 = arith.truncf %97 : vector<4x256xf32> to vector<4x256xbf16>
    %cst_63 = arith.constant dense<0.000000e+00> : vector<4x256xf32>
    %101 = tpu.matmul %99, %100, %cst_63 {dimension_numbers = #tpu.dot_dimension_numbers<[1], [0], [0], [1], [0, 0, 1, 1], [], []>} : vector<4x4xbf16>, vector<4x256xbf16>, vector<4x256xf32> -> vector<4x256xf32>
    %102 = arith.addf %93, %101 : vector<4x256xf32>
    %c15_i32_64 = arith.constant 15 : i32
    %103 = tpu.dynamic_rotate %85 by %c15_i32_64 dim 1 : vector<4x256xf32>, i32 -> vector<4x256xf32>
    %c2_65 = arith.constant 2 : index
    %c0_66 = arith.constant 0 : index
    %104 = vector.load %arg6[%c2_65, %c0_66] : memref<9x256xf32, #tpu.memory_space<vmem>>, vector<1x256xf32>
    %105 = vector.broadcast %104 : vector<1x256xf32> to vector<4x256xf32>
    %106 = arith.mulf %103, %105 : vector<4x256xf32>
    %c2_67 = arith.constant 2 : index
    %c0_68 = arith.constant 0 : index
    %c0_69 = arith.constant 0 : index
    %107 = vector.load %arg4[%c2_67, %c0_68, %c0_69] : memref<9x4x4xbf16, #tpu.memory_space<vmem>>, vector<1x4x4xbf16>
    %108 = vector.shape_cast %107 : vector<1x4x4xbf16> to vector<4x4xbf16>
    %109 = arith.truncf %106 : vector<4x256xf32> to vector<4x256xbf16>
    %cst_70 = arith.constant dense<0.000000e+00> : vector<4x256xf32>
    %110 = tpu.matmul %108, %109, %cst_70 {dimension_numbers = #tpu.dot_dimension_numbers<[1], [0], [0], [1], [0, 0, 1, 1], [], []>} : vector<4x4xbf16>, vector<4x256xbf16>, vector<4x256xf32> -> vector<4x256xf32>
    %111 = arith.addf %102, %110 : vector<4x256xf32>
    %c1_i32_71 = arith.constant 1 : i32
    %112 = tpu.dynamic_rotate %85 by %c1_i32_71 dim 1 : vector<4x256xf32>, i32 -> vector<4x256xf32>
    %c3_72 = arith.constant 3 : index
    %c0_73 = arith.constant 0 : index
    %113 = vector.load %arg6[%c3_72, %c0_73] : memref<9x256xf32, #tpu.memory_space<vmem>>, vector<1x256xf32>
    %114 = vector.broadcast %113 : vector<1x256xf32> to vector<4x256xf32>
    %115 = arith.mulf %112, %114 : vector<4x256xf32>
    %c3_74 = arith.constant 3 : index
    %c0_75 = arith.constant 0 : index
    %c0_76 = arith.constant 0 : index
    %116 = vector.load %arg4[%c3_74, %c0_75, %c0_76] : memref<9x4x4xbf16, #tpu.memory_space<vmem>>, vector<1x4x4xbf16>
    %117 = vector.shape_cast %116 : vector<1x4x4xbf16> to vector<4x4xbf16>
    %118 = arith.truncf %115 : vector<4x256xf32> to vector<4x256xbf16>
    %cst_77 = arith.constant dense<0.000000e+00> : vector<4x256xf32>
    %119 = tpu.matmul %117, %118, %cst_77 {dimension_numbers = #tpu.dot_dimension_numbers<[1], [0], [0], [1], [0, 0, 1, 1], [], []>} : vector<4x4xbf16>, vector<4x256xbf16>, vector<4x256xf32> -> vector<4x256xf32>
    %120 = arith.addf %111, %119 : vector<4x256xf32>
    %c4_78 = arith.constant 4 : index
    %c0_79 = arith.constant 0 : index
    %121 = vector.load %arg6[%c4_78, %c0_79] : memref<9x256xf32, #tpu.memory_space<vmem>>, vector<1x256xf32>
    %122 = vector.broadcast %121 : vector<1x256xf32> to vector<4x256xf32>
    %123 = arith.mulf %85, %122 : vector<4x256xf32>
    %c4_80 = arith.constant 4 : index
    %c0_81 = arith.constant 0 : index
    %c0_82 = arith.constant 0 : index
    %124 = vector.load %arg4[%c4_80, %c0_81, %c0_82] : memref<9x4x4xbf16, #tpu.memory_space<vmem>>, vector<1x4x4xbf16>
    %125 = vector.shape_cast %124 : vector<1x4x4xbf16> to vector<4x4xbf16>
    %126 = arith.truncf %123 : vector<4x256xf32> to vector<4x256xbf16>
    %cst_83 = arith.constant dense<0.000000e+00> : vector<4x256xf32>
    %127 = tpu.matmul %125, %126, %cst_83 {dimension_numbers = #tpu.dot_dimension_numbers<[1], [0], [0], [1], [0, 0, 1, 1], [], []>} : vector<4x4xbf16>, vector<4x256xbf16>, vector<4x256xf32> -> vector<4x256xf32>
    %128 = arith.addf %120, %127 : vector<4x256xf32>
    %c255_i32_84 = arith.constant 255 : i32
    %129 = tpu.dynamic_rotate %85 by %c255_i32_84 dim 1 : vector<4x256xf32>, i32 -> vector<4x256xf32>
    %c5_85 = arith.constant 5 : index
    %c0_86 = arith.constant 0 : index
    %130 = vector.load %arg6[%c5_85, %c0_86] : memref<9x256xf32, #tpu.memory_space<vmem>>, vector<1x256xf32>
    %131 = vector.broadcast %130 : vector<1x256xf32> to vector<4x256xf32>
    %132 = arith.mulf %129, %131 : vector<4x256xf32>
    %c5_87 = arith.constant 5 : index
    %c0_88 = arith.constant 0 : index
    %c0_89 = arith.constant 0 : index
    %133 = vector.load %arg4[%c5_87, %c0_88, %c0_89] : memref<9x4x4xbf16, #tpu.memory_space<vmem>>, vector<1x4x4xbf16>
    %134 = vector.shape_cast %133 : vector<1x4x4xbf16> to vector<4x4xbf16>
    %135 = arith.truncf %132 : vector<4x256xf32> to vector<4x256xbf16>
    %cst_90 = arith.constant dense<0.000000e+00> : vector<4x256xf32>
    %136 = tpu.matmul %134, %135, %cst_90 {dimension_numbers = #tpu.dot_dimension_numbers<[1], [0], [0], [1], [0, 0, 1, 1], [], []>} : vector<4x4xbf16>, vector<4x256xbf16>, vector<4x256xf32> -> vector<4x256xf32>
    %137 = arith.addf %128, %136 : vector<4x256xf32>
    %c241_i32_91 = arith.constant 241 : i32
    %138 = tpu.dynamic_rotate %85 by %c241_i32_91 dim 1 : vector<4x256xf32>, i32 -> vector<4x256xf32>
    %c6_92 = arith.constant 6 : index
    %c0_93 = arith.constant 0 : index
    %139 = vector.load %arg6[%c6_92, %c0_93] : memref<9x256xf32, #tpu.memory_space<vmem>>, vector<1x256xf32>
    %140 = vector.broadcast %139 : vector<1x256xf32> to vector<4x256xf32>
    %141 = arith.mulf %138, %140 : vector<4x256xf32>
    %c6_94 = arith.constant 6 : index
    %c0_95 = arith.constant 0 : index
    %c0_96 = arith.constant 0 : index
    %142 = vector.load %arg4[%c6_94, %c0_95, %c0_96] : memref<9x4x4xbf16, #tpu.memory_space<vmem>>, vector<1x4x4xbf16>
    %143 = vector.shape_cast %142 : vector<1x4x4xbf16> to vector<4x4xbf16>
    %144 = arith.truncf %141 : vector<4x256xf32> to vector<4x256xbf16>
    %cst_97 = arith.constant dense<0.000000e+00> : vector<4x256xf32>
    %145 = tpu.matmul %143, %144, %cst_97 {dimension_numbers = #tpu.dot_dimension_numbers<[1], [0], [0], [1], [0, 0, 1, 1], [], []>} : vector<4x4xbf16>, vector<4x256xbf16>, vector<4x256xf32> -> vector<4x256xf32>
    %146 = arith.addf %137, %145 : vector<4x256xf32>
    %c240_i32_98 = arith.constant 240 : i32
    %147 = tpu.dynamic_rotate %85 by %c240_i32_98 dim 1 : vector<4x256xf32>, i32 -> vector<4x256xf32>
    %c7_99 = arith.constant 7 : index
    %c0_100 = arith.constant 0 : index
    %148 = vector.load %arg6[%c7_99, %c0_100] : memref<9x256xf32, #tpu.memory_space<vmem>>, vector<1x256xf32>
    %149 = vector.broadcast %148 : vector<1x256xf32> to vector<4x256xf32>
    %150 = arith.mulf %147, %149 : vector<4x256xf32>
    %c7_101 = arith.constant 7 : index
    %c0_102 = arith.constant 0 : index
    %c0_103 = arith.constant 0 : index
    %151 = vector.load %arg4[%c7_101, %c0_102, %c0_103] : memref<9x4x4xbf16, #tpu.memory_space<vmem>>, vector<1x4x4xbf16>
    %152 = vector.shape_cast %151 : vector<1x4x4xbf16> to vector<4x4xbf16>
    %153 = arith.truncf %150 : vector<4x256xf32> to vector<4x256xbf16>
    %cst_104 = arith.constant dense<0.000000e+00> : vector<4x256xf32>
    %154 = tpu.matmul %152, %153, %cst_104 {dimension_numbers = #tpu.dot_dimension_numbers<[1], [0], [0], [1], [0, 0, 1, 1], [], []>} : vector<4x4xbf16>, vector<4x256xbf16>, vector<4x256xf32> -> vector<4x256xf32>
    %155 = arith.addf %146, %154 : vector<4x256xf32>
    %c239_i32_105 = arith.constant 239 : i32
    %156 = tpu.dynamic_rotate %85 by %c239_i32_105 dim 1 : vector<4x256xf32>, i32 -> vector<4x256xf32>
    %c8_106 = arith.constant 8 : index
    %c0_107 = arith.constant 0 : index
    %157 = vector.load %arg6[%c8_106, %c0_107] : memref<9x256xf32, #tpu.memory_space<vmem>>, vector<1x256xf32>
    %158 = vector.broadcast %157 : vector<1x256xf32> to vector<4x256xf32>
    %159 = arith.mulf %156, %158 : vector<4x256xf32>
    %c8_108 = arith.constant 8 : index
    %c0_109 = arith.constant 0 : index
    %c0_110 = arith.constant 0 : index
    %160 = vector.load %arg4[%c8_108, %c0_109, %c0_110] : memref<9x4x4xbf16, #tpu.memory_space<vmem>>, vector<1x4x4xbf16>
    %161 = vector.shape_cast %160 : vector<1x4x4xbf16> to vector<4x4xbf16>
    %162 = arith.truncf %159 : vector<4x256xf32> to vector<4x256xbf16>
    %cst_111 = arith.constant dense<0.000000e+00> : vector<4x256xf32>
    %163 = tpu.matmul %161, %162, %cst_111 {dimension_numbers = #tpu.dot_dimension_numbers<[1], [0], [0], [1], [0, 0, 1, 1], [], []>} : vector<4x4xbf16>, vector<4x256xbf16>, vector<4x256xf32> -> vector<4x256xf32>
    %164 = arith.addf %155, %163 : vector<4x256xf32>
    %c0_112 = arith.constant 0 : index
    %c0_113 = arith.constant 0 : index
    %165 = vector.load %arg5[%c0_112, %c0_113] : memref<4x1xf32, #tpu.memory_space<vmem>>, vector<4x1xf32>
    %166 = vector.broadcast %165 : vector<4x1xf32> to vector<4x256xf32>
    %167 = arith.addf %164, %166 : vector<4x256xf32>
    %168 = arith.addf %1, %167 : vector<4x256xf32>
    %cst_114 = arith.constant 0.000000e+00 : f32
    %169 = vector.broadcast %cst_114 : f32 to vector<4x256xf32>
    %170 = arith.maximumf %168, %169 : vector<4x256xf32>
    %c0_115 = arith.constant 0 : index
    %c0_116 = arith.constant 0 : index
    %c0_117 = arith.constant 0 : index
    %171 = vector.load %arg7[%c0_115, %c0_116, %c0_117] : memref<1x4x256xf32, #tpu.memory_space<vmem>>, vector<1x4x256xf32>
    %172 = vector.shape_cast %171 : vector<1x4x256xf32> to vector<4x256xf32>
    %173 = vector.shape_cast %170 : vector<4x256xf32> to vector<1x4x256xf32>
    tpu.vector_store %arg7[%c0_115, %c0_116, %c0_117], %173 {strides = array<i32>} : memref<1x4x256xf32, #tpu.memory_space<vmem>>, vector<1x4x256xf32>,
    return
  }
  func.func @transform_0(%arg0: i32) -> (i32, i32, i32) {
    %c0_i32 = arith.constant 0 : i32
    %c0_i32_0 = arith.constant 0 : i32
    %c0_i32_1 = arith.constant 0 : i32
    return %arg0, %c0_i32, %c0_i32_0 : i32, i32, i32
  }
  func.func @transform_1(%arg0: i32) -> (i32, i32, i32) {
    %c0_i32 = arith.constant 0 : i32
    %c0_i32_0 = arith.constant 0 : i32
    %c0_i32_1 = arith.constant 0 : i32
    %c0_i32_2 = arith.constant 0 : i32
    return %c0_i32, %c0_i32_0, %c0_i32_1 : i32, i32, i32
  }
  func.func @transform_2(%arg0: i32) -> (i32, i32) {
    %c0_i32 = arith.constant 0 : i32
    %c0_i32_0 = arith.constant 0 : i32
    %c0_i32_1 = arith.constant 0 : i32
    return %c0_i32, %c0_i32_0 : i32, i32
  }
  func.func @transform_3(%arg0: i32) -> (i32, i32, i32) {
    %c0_i32 = arith.constant 0 : i32
    %c0_i32_0 = arith.constant 0 : i32
    %c0_i32_1 = arith.constant 0 : i32
    %c0_i32_2 = arith.constant 0 : i32
    return %c0_i32, %c0_i32_0, %c0_i32_1 : i32, i32, i32
  }
  func.func @transform_4(%arg0: i32) -> (i32, i32) {
    %c0_i32 = arith.constant 0 : i32
    %c0_i32_0 = arith.constant 0 : i32
    %c0_i32_1 = arith.constant 0 : i32
    return %c0_i32, %c0_i32_0 : i32, i32
  }
  func.func @transform_5(%arg0: i32) -> (i32, i32) {
    %c0_i32 = arith.constant 0 : i32
    %c0_i32_0 = arith.constant 0 : i32
    %c0_i32_1 = arith.constant 0 : i32
    return %c0_i32, %c0_i32_0 : i32, i32
  }
  func.func @transform_6(%arg0: i32) -> (i32, i32, i32) {
    %c0_i32 = arith.constant 0 : i32
    %c0_i32_0 = arith.constant 0 : i32
    %c0_i32_1 = arith.constant 0 : i32
    return %arg0, %c0_i32, %c0_i32_0 : i32, i32, i32
  }
}

</mosaic_0001>

<llo_original>
// kernel: tpu_custom_call.1
$region0: #{tpu_custom_call.1}
  #allocation0 [shape = 'u32[]', space=smem, size = 0x4, offset = 0x4, fixed_abs, tag = 'smem constant byte address 0x4 - core index']
  #allocation1 [shape = 'u32[144,128]{1,0:T(1,128)}', space=vmem, size = 0x12000, scoped, tag = 'internal scratch']
  %s0 = inlined_call_operand.vmem [shape: f32[2,4,256], index: 0, kind: input, shape index: {}]
  %s1 = inlined_call_operand.vmem [shape: bf16[9,4,4], index: 1, kind: input, shape index: {}]
  %s2 = inlined_call_operand.vmem [shape: f32[4,1], index: 2, kind: input, shape index: {}]
  %s3 = inlined_call_operand.vmem [shape: bf16[9,4,4], index: 3, kind: input, shape index: {}]
  %s4 = inlined_call_operand.vmem [shape: f32[4,1], index: 4, kind: input, shape index: {}]
  %s5 = inlined_call_operand.vmem [shape: f32[9,256], index: 5, kind: input, shape index: {}]
  %s6 = inlined_call_operand.hbm [shape: f32[2,4,256], index: 6, kind: output, shape index: {}]
  %s7 = sld [smem:[#allocation0]]
  $region57: #{tpu_custom_call.1} parent=0
    _
  %s9 = ssub.s32 1, %s7
  %s10 = scalar_select 0, %s9, %s7
  $region1: #{tpu_custom_call.1} parent=0
    #allocation2 [shape = 'u8[8192]{0}', space=vmem, size = 0x2000, scoped, tag = 'output window, operand 0']
    #allocation3 [shape = 's32[2]{0}', space=sflag, size = 0x8, scoped, tag = 'scoped memory for tpu_custom_call.1']
    %11 = vsyncpa [#allocation3], 0
    %s12 = scalar_lea.sflag [#allocation3], 1
    %13 = vsyncpa %s12, 0
    loop: start=0, step=1, limit=4
    $region2: #{tpu_custom_call.1} parent=1 // loop_pre_header
      _
    $region3: #{tpu_custom_call.1} parent=1 // loop_header
      %s15 = sphi 0, %s19
      %p16 = scmp.ge.s32.totalorder %s15, 4
      %s25 = sphi 0, %s27
      %s28 = sphi 0, %s25
      %s29 = sphi 0, %s28
      %s45 = sphi 0, %s29
      %s49 = sphi 0, %s49
      %s51 = sphi 0, %s49
      %s52 = sphi 0, %s51
      %s66 = sphi 0, %s52
      %s70 = sphi 0, %s70
      %s72 = sphi 0, %s70
      %s73 = sphi 0, %s72
      %s87 = sphi 0, %s73
      %s91 = sphi 0, %s91
      %s93 = sphi 0, %s91
      %s94 = sphi 0, %s93
      %s108 = sphi 0, %s94
      %s112 = sphi 0, %s112
      %s114 = sphi 0, %s112
      %s115 = sphi 0, %s114
      %s129 = sphi 0, %s115
      %s133 = sphi 0, %s133
      %s135 = sphi 0, %s133
      %s136 = sphi 0, %s135
      %s150 = sphi 0, %s136
      %s156 = sphi 0, %s158
      %s159 = sphi 0, %s156
      %s160 = sphi 0, %s159
      %s176 = sphi 0, %s160
    $region4: #{tpu_custom_call.1} parent=1 // loop_header_branch
      %18 = sbr.rel (%p16) target = $region8
    $region5: #{tpu_custom_call.1} parent=1 // loop_body
      %s20 = ssub.s32 %s15, 1
      %s21 = ssub.s32 %s15, 2
      %s22 = sadd.s32 %s15, 1
      %s23 = ssub.s32 %s15, %s22
      %p24 = scmp.eq.s32.totalorder %s23, 0
      %s26 = sadd.s32 %s25, 1
      %s27 = scalar_select %p24, %s25, %s26
      %p30 = pneg %p24
      %p31 = scmp.eq.s32.totalorder %s15, 1
      %p32 = por %p30, %p31
      %p33 = scmp.ne.s32.totalorder %s25, %s28
      %p34 = scmp.eq.s32.totalorder %s15, 0
      %p35 = por %p33, %p34
      %p36 = scmp.ne.s32.totalorder %s25, %s28
      %p37 = scmp.eq.s32.totalorder %s20, 1
      %p38 = por %p36, %p37
      %p39 = scmp.ne.s32.totalorder %s28, %s29
      %p40 = scmp.eq.s32.totalorder %s20, 0
      %p41 = por %p39, %p40
      %p42 = scmp.ne.s32.totalorder %s28, %s29
      %p43 = scmp.eq.s32.totalorder %s21, 1
      %p44 = por %p42, %p43
      %p46 = scmp.ne.s32.totalorder %s29, %s45
      %p47 = scmp.eq.s32.totalorder %s21, 0
      %p48 = por %p46, %p47
      %s50 = sadd.s32 %s49, 1
      %p53 = scmp.eq.s32.totalorder %s15, 1
      %p54 = scmp.ne.s32.totalorder %s49, %s51
      %p55 = scmp.eq.s32.totalorder %s15, 0
      %p56 = por %p54, %p55
      %p57 = scmp.ne.s32.totalorder %s49, %s51
      %p58 = scmp.eq.s32.totalorder %s20, 1
      %p59 = por %p57, %p58
      %p60 = scmp.ne.s32.totalorder %s51, %s52
      %p61 = scmp.eq.s32.totalorder %s20, 0
      %p62 = por %p60, %p61
      %p63 = scmp.ne.s32.totalorder %s51, %s52
      %p64 = scmp.eq.s32.totalorder %s21, 1
      %p65 = por %p63, %p64
      %p67 = scmp.ne.s32.totalorder %s52, %s66
      %p68 = scmp.eq.s32.totalorder %s21, 0
      %p69 = por %p67, %p68
      %s71 = sadd.s32 %s70, 1
      %p74 = scmp.eq.s32.totalorder %s15, 1
      %p75 = scmp.ne.s32.totalorder %s70, %s72
      %p76 = scmp.eq.s32.totalorder %s15, 0
      %p77 = por %p75, %p76
      %p78 = scmp.ne.s32.totalorder %s70, %s72
      %p79 = scmp.eq.s32.totalorder %s20, 1
      %p80 = por %p78, %p79
      %p81 = scmp.ne.s32.totalorder %s72, %s73
      %p82 = scmp.eq.s32.totalorder %s20, 0
      %p83 = por %p81, %p82
      %p84 = scmp.ne.s32.totalorder %s72, %s73
      %p85 = scmp.eq.s32.totalorder %s21, 1
      %p86 = por %p84, %p85
      %p88 = scmp.ne.s32.totalorder %s73, %s87
      %p89 = scmp.eq.s32.totalorder %s21, 0
      %p90 = por %p88, %p89
      %s92 = sadd.s32 %s91, 1
      %p95 = scmp.eq.s32.totalorder %s15, 1
      %p96 = scmp.ne.s32.totalorder %s91, %s93
      %p97 = scmp.eq.s32.totalorder %s15, 0
      %p98 = por %p96, %p97
      %p99 = scmp.ne.s32.totalorder %s91, %s93
      %p100 = scmp.eq.s32.totalorder %s20, 1
      %p101 = por %p99, %p100
      %p102 = scmp.ne.s32.totalorder %s93, %s94
      %p103 = scmp.eq.s32.totalorder %s20, 0
      %p104 = por %p102, %p103
      %p105 = scmp.ne.s32.totalorder %s93, %s94
      %p106 = scmp.eq.s32.totalorder %s21, 1
      %p107 = por %p105, %p106
      %p109 = scmp.ne.s32.totalorder %s94, %s108
      %p110 = scmp.eq.s32.totalorder %s21, 0
      %p111 = por %p109, %p110
      %s113 = sadd.s32 %s112, 1
      %p116 = scmp.eq.s32.totalorder %s15, 1
      %p117 = scmp.ne.s32.totalorder %s112, %s114
      %p118 = scmp.eq.s32.totalorder %s15, 0
      %p119 = por %p117, %p118
      %p120 = scmp.ne.s32.totalorder %s112, %s114
      %p121 = scmp.eq.s32.totalorder %s20, 1
      %p122 = por %p120, %p121
      %p123 = scmp.ne.s32.totalorder %s114, %s115
      %p124 = scmp.eq.s32.totalorder %s20, 0
      %p125 = por %p123, %p124
      %p126 = scmp.ne.s32.totalorder %s114, %s115
      %p127 = scmp.eq.s32.totalorder %s21, 1
      %p128 = por %p126, %p127
      %p130 = scmp.ne.s32.totalorder %s115, %s129
      %p131 = scmp.eq.s32.totalorder %s21, 0
      %p132 = por %p130, %p131
      %s134 = sadd.s32 %s133, 1
      %p137 = scmp.eq.s32.totalorder %s15, 1
      %p138 = scmp.ne.s32.totalorder %s133, %s135
      %p139 = scmp.eq.s32.totalorder %s15, 0
      %p140 = por %p138, %p139
      %p141 = scmp.ne.s32.totalorder %s133, %s135
      %p142 = scmp.eq.s32.totalorder %s20, 1
      %p143 = por %p141, %p142
      %p144 = scmp.ne.s32.totalorder %s135, %s136
      %p145 = scmp.eq.s32.totalorder %s20, 0
      %p146 = por %p144, %p145
      %p147 = scmp.ne.s32.totalorder %s135, %s136
      %p148 = scmp.eq.s32.totalorder %s21, 1
      %p149 = por %p147, %p148
      %p151 = scmp.ne.s32.totalorder %s136, %s150
      %p152 = scmp.eq.s32.totalorder %s21, 0
      %p153 = por %p151, %p152
      %s154 = ssub.s32 %s15, %s22
      %p155 = scmp.eq.s32.totalorder %s154, 0
      %s157 = sadd.s32 %s156, 1
      %s158 = scalar_select %p155, %s156, %s157
      %p161 = pneg %p155
      %p162 = scmp.eq.s32.totalorder %s15, 1
      %p163 = por %p161, %p162
      %p164 = scmp.ne.s32.totalorder %s156, %s159
      %p165 = scmp.eq.s32.totalorder %s15, 0
      %p166 = por %p164, %p165
      %p167 = scmp.ne.s32.totalorder %s156, %s159
      %p168 = scmp.eq.s32.totalorder %s20, 1
      %p169 = por %p167, %p168
      %p170 = scmp.ne.s32.totalorder %s159, %s160
      %p171 = scmp.eq.s32.totalorder %s20, 0
      %p172 = por %p170, %p171
      %p173 = scmp.ne.s32.totalorder %s159, %s160
      %p174 = scmp.eq.s32.totalorder %s21, 1
      %p175 = por %p173, %p174
      %p177 = scmp.ne.s32.totalorder %s160, %s176
      %p178 = scmp.eq.s32.totalorder %s21, 0
      %p179 = por %p177, %p178
      %p180 = scmp.le.s32.totalorder 1, %s15
      %p181 = scmp.lt.s32.totalorder %s15, 3
      %p182 = pnand %p180, %p181
      %p183 = pneg %p182
      // Predicated region
      $region9: #{tpu_custom_call.1} parent=5 // pred_check
        _
      $region10: #{tpu_custom_call.1} parent=5 // pred_check_branch
        %185 = sbr.rel (%p182) target = $region12
      $region11: #{tpu_custom_call.1} parent=5 // pred_region
        %s186 = ssub.s32 %s15, 1
        // Predicated region
        $region13: #{tpu_custom_call.1} parent=11 // pred_check
          %p187 = pneg %p62
        $region14: #{tpu_custom_call.1} parent=11 // pred_check_branch
          %189 = sbr.rel (%p187) target = $region16
        $region15: #{tpu_custom_call.1} parent=11 // pred_region
          _
        $region16: #{tpu_custom_call.1} parent=11 // pred_fallthru
          _
        // Predicated region
        $region17: #{tpu_custom_call.1} parent=11 // pred_check
          %p190 = pneg %p83
        $region18: #{tpu_custom_call.1} parent=11 // pred_check_branch
          %192 = sbr.rel (%p190) target = $region20
        $region19: #{tpu_custom_call.1} parent=11 // pred_region
          _
        $region20: #{tpu_custom_call.1} parent=11 // pred_fallthru
          _
        // Predicated region
        $region21: #{tpu_custom_call.1} parent=11 // pred_check
          %p193 = pneg %p104
        $region22: #{tpu_custom_call.1} parent=11 // pred_check_branch
          %195 = sbr.rel (%p193) target = $region24
        $region23: #{tpu_custom_call.1} parent=11 // pred_region
          _
        $region24: #{tpu_custom_call.1} parent=11 // pred_fallthru
          _
        // Predicated region
        $region25: #{tpu_custom_call.1} parent=11 // pred_check
          %p196 = pneg %p125
        $region26: #{tpu_custom_call.1} parent=11 // pred_check_branch
          %198 = sbr.rel (%p196) target = $region28
        $region27: #{tpu_custom_call.1} parent=11 // pred_region
          _
        $region28: #{tpu_custom_call.1} parent=11 // pred_fallthru
          _
        // Predicated region
        $region29: #{tpu_custom_call.1} parent=11 // pred_check
          %p199 = pneg %p146
        $region30: #{tpu_custom_call.1} parent=11 // pred_check_branch
          %201 = sbr.rel (%p199) target = $region32
        $region31: #{tpu_custom_call.1} parent=11 // pred_region
          _
        $region32: #{tpu_custom_call.1} parent=11 // pred_fallthru
          _
      $region12: #{tpu_custom_call.1} parent=5 // pred_fallthru
        _
      %p202 = scmp.lt.s32.totalorder %s15, 2
      // Predicated region
      $region33: #{tpu_custom_call.1} parent=5 // pred_check
        %p203 = pneg %p202
      $region34: #{tpu_custom_call.1} parent=5 // pred_check_branch
        %205 = sbr.rel (%p203) target = $region36
      $region35: #{tpu_custom_call.1} parent=5 // pred_region
        // Predicated region
        $region37: #{tpu_custom_call.1} parent=35 // pred_check
          %p206 = pneg %p35
        $region38: #{tpu_custom_call.1} parent=35 // pred_check_branch
          %208 = sbr.rel (%p206) target = $region40
        $region39: #{tpu_custom_call.1} parent=35 // pred_region
          %p209 = scmp.lt.s32.totalorder %s15, 1
          %s210 = scalar_select %p209, %s15, 1
          %s211 = smul.addr %s210, 2
          %s212 = smul.addr %s211, 4
          %s213 = scalar_lea.vmem %s0, %s212
        $region40: #{tpu_custom_call.1} parent=35 // pred_fallthru
          _
      $region36: #{tpu_custom_call.1} parent=5 // pred_fallthru
        _
      %p214 = scmp.le.s32.totalorder 1, %s15
      %p215 = scmp.lt.s32.totalorder %s15, 3
      %p216 = pnand %p214, %p215
      %p217 = pneg %p216
      // Predicated region
      $region41: #{tpu_custom_call.1} parent=5 // pred_check
        _
      $region42: #{tpu_custom_call.1} parent=5 // pred_check_branch
        %219 = sbr.rel (%p216) target = $region44
      $region43: #{tpu_custom_call.1} parent=5 // pred_region
        %s220 = ssub.s32 %s15, 1
        %p221 = scmp.lt.s32.totalorder %s20, 1
        %s222 = scalar_select %p221, %s20, 1
        %s223 = smul.addr %s222, 2
        %s224 = smul.addr %s223, 4
        %s225 = scalar_lea.vmem %s0, %s224
        %p226 = pneg %p41
        %p227 = pneg %p38
        %p228 = pneg %p62
        %p229 = pneg %p59
        %p230 = pneg %p83
        %p231 = pneg %p80
        %p232 = pneg %p104
        %p233 = pneg %p101
        %p234 = pneg %p125
        %p235 = pneg %p122
        %p236 = pneg %p146
        %p237 = pneg %p143
        %p238 = pneg %p172
        %p239 = pneg %p169
        %s240 = sand.u32 %s159, 1
        %s241 = scalar_lea.sflag [#allocation3], %s240
        %s242 = sand.u32 %s159, 1
        %s243 = smul.addr %s242, 8
        %s244 = scalar_lea.vmem [#allocation2], %s243
        %p245 = scmp.lt.s32.totalorder %s20, 1
        %s246 = scalar_select %p245, %s20, 1
        %s247 = smul.addr %s246, 2
        %s248 = smul.addr %s247, 4
        %s249 = scalar_lea.vmem %s0, %s248
        %v251 = vld [vmem:[%s249] sm:$0xff]
        %v253 = vcombine.high %v251, %v251
        %255 = vrot.lane.b32.xlu0 %v251, 17
        %v256 = vpop.permute.xlu0 %255
        %257 = vrot.lane.b32.xlu0 %v253, 17
        %v258 = vpop.permute.xlu0 %257
        %v259 = vlaneseq
        %v260 = vand.u32 %v259, 127
        %vm261 = vcmp.lt.s32.totalorder %v260, 17
        %v262 = vsel %vm261, %v256, %v258
        %v263 = vsel %vm261, %v258, %v256
        %v264 = vld [vmem:[%s5] ss:$8 sm:$0x3]
        %v266 = vlaneseq
        %v267 = vshrl.u32 %v266, 7
        %v268 = vsub.s32 0, %v267
        %v269 = vrot.slane %v264, %v268
        %v270 = vlaneseq
        %v271 = vshrl.u32 %v270, 7
        %v272 = vsub.s32 1, %v271
        %v273 = vrot.slane %v264, %v272
        %v276 = vmul.f32 %v263, %v269
        %v277 = vmul.f32 %v262, %v273
        %v278 = vld [vmem:[%s1] sm:$0x3]
        %v279 = vpack.c.bf16 %v276, %v276
        %v280 = vpack.c.bf16 %v277, %v277
        %281 = vrot.lane.b32.xlu0 %v251, 16
        %v282 = vpop.permute.xlu0 %281
        %283 = vrot.lane.b32.xlu0 %v253, 16
        %v284 = vpop.permute.xlu0 %283
        %vm285 = vcmp.lt.s32.totalorder %v260, 16
        %v286 = vsel %vm285, %v282, %v284
        %v287 = vsel %vm285, %v284, %v282
        %s288 = scalar_lea.vmem %s5, 1
        %v289 = vld [vmem:[%s288] ss:$8 sm:$0x3]
        %v291 = vlaneseq
        %v292 = vshrl.u32 %v291, 7
        %v293 = vsub.s32 0, %v292
        %v294 = vrot.slane %v289, %v293
        %v295 = vlaneseq
        %v296 = vshrl.u32 %v295, 7
        %v297 = vsub.s32 1, %v296
        %v298 = vrot.slane %v289, %v297
        %v301 = vmul.f32 %v287, %v294
        %v302 = vmul.f32 %v286, %v298
        %s303 = scalar_lea.vmem %s1, 2
        %v304 = vld [vmem:[%s303] sm:$0x3]
        %v305 = vpack.c.bf16 %v301, %v301
        %v306 = vpack.c.bf16 %v302, %v302
        %vm307 = vcmask 31744
        %v309 = vsel %vm307, %v304, 0
        %vm311 = vcmask 1041408
        %v313 = vsel %vm311, %v305, 0
        %v316 = vsel %vm311, %v306, 0
        %318 = vmatprep.subr.bf16.mxu0 %v316
        %319 = vmatpush1.bf16.msra.mxu0 %v313
        %320 = vmatprep.subr.bf16.mxu0 0
        %321 = vmatpush1.bf16.msra.mxu0 0
        %322 = vmatprep.subr.bf16.mxu0 0
        %323 = vmatpush1.bf16.msra.mxu0 0
        %324 = vmatprep.subr.bf16.mxu0 0
        %325 = vmatpush1.bf16.msra.mxu0 0
        %326 = vmatprep.subr.bf16.mxu0 0
        %327 = vmatpush1.bf16.msra.mxu0 0
        %328 = vmatprep.subr.bf16.mxu0 0
        %329 = vmatpush1.bf16.msra.mxu0 0
        %330 = vmatprep.subr.bf16.mxu0 0
        %331 = vmatpush1.bf16.msra.mxu0 0
        %332 = vmatprep.subr.bf16.mxu0 0
        %333 = vmatpush1.bf16.msra.mxu0 0
        %334 = vmatprep.subr.bf16.mxu0 0
        %335 = vmatpush1.bf16.msra.mxu0 0
        %336 = vmatprep.subr.bf16.mxu0 0
        %337 = vmatpush1.bf16.msra.mxu0 0
        %338 = vmatprep.subr.bf16.mxu0 0
        %339 = vmatpush1.bf16.msra.mxu0 0
        %340 = vmatprep.subr.bf16.mxu0 0
        %341 = vmatpush1.bf16.msra.mxu0 0
        %342 = vmatprep.subr.bf16.mxu0 0
        %343 = vmatpush1.bf16.msra.mxu0 0
        %344 = vmatprep.subr.bf16.mxu0 0
        %345 = vmatpush1.bf16.msra.mxu0 0
        %346 = vmatprep.subr.bf16.mxu0 0
        %347 = vmatpush1.bf16.msra.mxu0 0
        %348 = vmatprep.subr.bf16.mxu0 0
        %349 = vmatpush1.bf16.msra.mxu0 0
        %350 = vmatprep.mubr.bf16.mxu0 0
        %351 = vmatmul.mubr.bf16.gmra.mrb[0].mxu0 %v309
        %v352 = vpop.f32.mrb[0].mxu0
        %v353 = vadd.f32 0.0, %v352
        %v354 = vpop.f32.mrb[0].mxu0
        %v355 = vadd.f32 0.0, %v354
        %v356 = vpop.f32.mrb[0].mxu0
        %v357 = vpop.f32.mrb[0].mxu0
        %358 = vdwg.mxu0
        %v360 = vsel %vm307, %v278, 0
        %v363 = vsel %vm311, %v279, 0
        %v366 = vsel %vm311, %v280, 0
        %368 = vmatprep.subr.bf16.mxu0 %v366
        %369 = vmatpush1.bf16.msra.mxu0 %v363
        %370 = vmatprep.subr.bf16.mxu0 0
        %371 = vmatpush1.bf16.msra.mxu0 0
        %372 = vmatprep.subr.bf16.mxu0 0
        %373 = vmatpush1.bf16.msra.mxu0 0
        %374 = vmatprep.subr.bf16.mxu0 0
        %375 = vmatpush1.bf16.msra.mxu0 0
        %376 = vmatprep.subr.bf16.mxu0 0
        %377 = vmatpush1.bf16.msra.mxu0 0
        %378 = vmatprep.subr.bf16.mxu0 0
        %379 = vmatpush1.bf16.msra.mxu0 0
        %380 = vmatprep.subr.bf16.mxu0 0
        %381 = vmatpush1.bf16.msra.mxu0 0
        %382 = vmatprep.subr.bf16.mxu0 0
        %383 = vmatpush1.bf16.msra.mxu0 0
        %384 = vmatprep.subr.bf16.mxu0 0
        %385 = vmatpush1.bf16.msra.mxu0 0
        %386 = vmatprep.subr.bf16.mxu0 0
        %387 = vmatpush1.bf16.msra.mxu0 0
        %388 = vmatprep.subr.bf16.mxu0 0
        %389 = vmatpush1.bf16.msra.mxu0 0
        %390 = vmatprep.subr.bf16.mxu0 0
        %391 = vmatpush1.bf16.msra.mxu0 0
        %392 = vmatprep.subr.bf16.mxu0 0
        %393 = vmatpush1.bf16.msra.mxu0 0
        %394 = vmatprep.subr.bf16.mxu0 0
        %395 = vmatpush1.bf16.msra.mxu0 0
        %396 = vmatprep.subr.bf16.mxu0 0
        %397 = vmatpush1.bf16.msra.mxu0 0
        %398 = vmatprep.subr.bf16.mxu0 0
        %399 = vmatpush1.bf16.msra.mxu0 0
        %400 = vmatprep.mubr.bf16.mxu0 0
        %401 = vmatmul.mubr.bf16.gmra.mrb[0].mxu0 %v360
        %v402 = vpop.f32.mrb[0].mxu0
        %v403 = vadd.f32 %v353, %v402
        %v404 = vpop.f32.mrb[0].mxu0
        %v405 = vadd.f32 %v355, %v404
        %v406 = vpop.f32.mrb[0].mxu0
        %v407 = vpop.f32.mrb[0].mxu0
        %408 = vdwg.mxu0
        %409 = vrot.lane.b32.xlu0 %v251, 15
        %v410 = vpop.permute.xlu0 %409
        %411 = vrot.lane.b32.xlu0 %v253, 15
        %v412 = vpop.permute.xlu0 %411
        %vm413 = vcmp.lt.s32.totalorder %v260, 15
        %v414 = vsel %vm413, %v410, %v412
        %v415 = vsel %vm413, %v412, %v410
        %s416 = scalar_lea.vmem %s5, 2
        %v417 = vld [vmem:[%s416] ss:$8 sm:$0x3]
        %v419 = vlaneseq
        %v420 = vshrl.u32 %v419, 7
        %v421 = vsub.s32 0, %v420
        %v422 = vrot.slane %v417, %v421
        %v423 = vlaneseq
        %v424 = vshrl.u32 %v423, 7
        %v425 = vsub.s32 1, %v424
        %v426 = vrot.slane %v417, %v425
        %v429 = vmul.f32 %v415, %v422
        %v430 = vmul.f32 %v414, %v426
        %s431 = scalar_lea.vmem %s1, 4
        %v432 = vld [vmem:[%s431] sm:$0x3]
        %v433 = vpack.c.bf16 %v429, %v429
        %v434 = vpack.c.bf16 %v430, %v430
        %v436 = vsel %vm307, %v432, 0
        %v439 = vsel %vm311, %v433, 0
        %v442 = vsel %vm311, %v434, 0
        %444 = vmatprep.subr.bf16.mxu0 %v442
        %445 = vmatpush1.bf16.msra.mxu0 %v439
        %446 = vmatprep.subr.bf16.mxu0 0
        %447 = vmatpush1.bf16.msra.mxu0 0
        %448 = vmatprep.subr.bf16.mxu0 0
        %449 = vmatpush1.bf16.msra.mxu0 0
        %450 = vmatprep.subr.bf16.mxu0 0
        %451 = vmatpush1.bf16.msra.mxu0 0
        %452 = vmatprep.subr.bf16.mxu0 0
        %453 = vmatpush1.bf16.msra.mxu0 0
        %454 = vmatprep.subr.bf16.mxu0 0
        %455 = vmatpush1.bf16.msra.mxu0 0
        %456 = vmatprep.subr.bf16.mxu0 0
        %457 = vmatpush1.bf16.msra.mxu0 0
        %458 = vmatprep.subr.bf16.mxu0 0
        %459 = vmatpush1.bf16.msra.mxu0 0
        %460 = vmatprep.subr.bf16.mxu0 0
        %461 = vmatpush1.bf16.msra.mxu0 0
        %462 = vmatprep.subr.bf16.mxu0 0
        %463 = vmatpush1.bf16.msra.mxu0 0
        %464 = vmatprep.subr.bf16.mxu0 0
        %465 = vmatpush1.bf16.msra.mxu0 0
        %466 = vmatprep.subr.bf16.mxu0 0
        %467 = vmatpush1.bf16.msra.mxu0 0
        %468 = vmatprep.subr.bf16.mxu0 0
        %469 = vmatpush1.bf16.msra.mxu0 0
        %470 = vmatprep.subr.bf16.mxu0 0
        %471 = vmatpush1.bf16.msra.mxu0 0
        %472 = vmatprep.subr.bf16.mxu0 0
        %473 = vmatpush1.bf16.msra.mxu0 0
        %474 = vmatprep.subr.bf16.mxu0 0
        %475 = vmatpush1.bf16.msra.mxu0 0
        %476 = vmatprep.mubr.bf16.mxu0 0
        %477 = vmatmul.mubr.bf16.gmra.mrb[0].mxu0 %v436
        %v478 = vpop.f32.mrb[0].mxu0
        %v479 = vadd.f32 0.0, %v478
        %v480 = vpop.f32.mrb[0].mxu0
        %v481 = vadd.f32 0.0, %v480
        %v482 = vpop.f32.mrb[0].mxu0
        %v483 = vpop.f32.mrb[0].mxu0
        %484 = vdwg.mxu0
        %v485 = vadd.f32 %v403, %v479
        %v486 = vadd.f32 %v405, %v481
        %487 = vrot.lane.b32.xlu0 %v251, 1
        %v488 = vpop.permute.xlu0 %487
        %489 = vrot.lane.b32.xlu0 %v253, 1
        %v490 = vpop.permute.xlu0 %489
        %vm491 = vcmp.lt.s32.totalorder %v260, 1
        %v492 = vsel %vm491, %v488, %v490
        %v493 = vsel %vm491, %v490, %v488
        %s494 = scalar_lea.vmem %s5, 3
        %v495 = vld [vmem:[%s494] ss:$8 sm:$0x3]
        %v497 = vlaneseq
        %v498 = vshrl.u32 %v497, 7
        %v499 = vsub.s32 0, %v498
        %v500 = vrot.slane %v495, %v499
        %v501 = vlaneseq
        %v502 = vshrl.u32 %v501, 7
        %v503 = vsub.s32 1, %v502
        %v504 = vrot.slane %v495, %v503
        %v507 = vmul.f32 %v493, %v500
        %v508 = vmul.f32 %v492, %v504
        %s509 = scalar_lea.vmem %s1, 6
        %v510 = vld [vmem:[%s509] sm:$0x3]
        %v511 = vpack.c.bf16 %v507, %v507
        %v512 = vpack.c.bf16 %v508, %v508
        %v514 = vsel %vm307, %v510, 0
        %v517 = vsel %vm311, %v511, 0
        %v520 = vsel %vm311, %v512, 0
        %522 = vmatprep.subr.bf16.mxu0 %v520
        %523 = vmatpush1.bf16.msra.mxu0 %v517
        %524 = vmatprep.subr.bf16.mxu0 0
        %525 = vmatpush1.bf16.msra.mxu0 0
        %526 = vmatprep.subr.bf16.mxu0 0
        %527 = vmatpush1.bf16.msra.mxu0 0
        %528 = vmatprep.subr.bf16.mxu0 0
        %529 = vmatpush1.bf16.msra.mxu0 0
        %530 = vmatprep.subr.bf16.mxu0 0
        %531 = vmatpush1.bf16.msra.mxu0 0
        %532 = vmatprep.subr.bf16.mxu0 0
        %533 = vmatpush1.bf16.msra.mxu0 0
        %534 = vmatprep.subr.bf16.mxu0 0
        %535 = vmatpush1.bf16.msra.mxu0 0
        %536 = vmatprep.subr.bf16.mxu0 0
        %537 = vmatpush1.bf16.msra.mxu0 0
        %538 = vmatprep.subr.bf16.mxu0 0
        %539 = vmatpush1.bf16.msra.mxu0 0
        %540 = vmatprep.subr.bf16.mxu0 0
        %541 = vmatpush1.bf16.msra.mxu0 0
        %542 = vmatprep.subr.bf16.mxu0 0
        %543 = vmatpush1.bf16.msra.mxu0 0
        %544 = vmatprep.subr.bf16.mxu0 0
        %545 = vmatpush1.bf16.msra.mxu0 0
        %546 = vmatprep.subr.bf16.mxu0 0
        %547 = vmatpush1.bf16.msra.mxu0 0
        %548 = vmatprep.subr.bf16.mxu0 0
        %549 = vmatpush1.bf16.msra.mxu0 0
        %550 = vmatprep.subr.bf16.mxu0 0
        %551 = vmatpush1.bf16.msra.mxu0 0
        %552 = vmatprep.subr.bf16.mxu0 0
        %553 = vmatpush1.bf16.msra.mxu0 0
        %554 = vmatprep.mubr.bf16.mxu0 0
        %555 = vmatmul.mubr.bf16.gmra.mrb[0].mxu0 %v514
        %v556 = vpop.f32.mrb[0].mxu0
        %v557 = vadd.f32 0.0, %v556
        %v558 = vpop.f32.mrb[0].mxu0
        %v559 = vadd.f32 0.0, %v558
        %v560 = vpop.f32.mrb[0].mxu0
        %v561 = vpop.f32.mrb[0].mxu0
        %562 = vdwg.mxu0
        %v563 = vadd.f32 %v485, %v557
        %v564 = vadd.f32 %v486, %v559
        %s565 = scalar_lea.vmem %s5, 4
        %v566 = vld [vmem:[%s565] ss:$8 sm:$0x3]
        %v568 = vlaneseq
        %v569 = vshrl.u32 %v568, 7
        %v570 = vsub.s32 0, %v569
        %v571 = vrot.slane %v566, %v570
        %v572 = vlaneseq
        %v573 = vshrl.u32 %v572, 7
        %v574 = vsub.s32 1, %v573
        %v575 = vrot.slane %v566, %v574
        %v578 = vcombine.low %v571, %v575
        %v580 = vmul.f32 %v251, %v578
        %s581 = scalar_lea.vmem %s1, 8
        %v582 = vld [vmem:[%s581] sm:$0x3]
        %v584 = vcombine.high %v580, %v580
        %v586 = vpack.c.bf16 %v580, %v580
        %v587 = vpack.c.bf16 %v584, %v584
        %v589 = vsel %vm307, %v582, 0
        %v592 = vsel %vm311, %v586, 0
        %v595 = vsel %vm311, %v587, 0
        %597 = vmatprep.subr.bf16.mxu0 %v595
        %598 = vmatpush1.bf16.msra.mxu0 %v592
        %599 = vmatprep.subr.bf16.mxu0 0
        %600 = vmatpush1.bf16.msra.mxu0 0
        %601 = vmatprep.subr.bf16.mxu0 0
        %602 = vmatpush1.bf16.msra.mxu0 0
        %603 = vmatprep.subr.bf16.mxu0 0
        %604 = vmatpush1.bf16.msra.mxu0 0
        %605 = vmatprep.subr.bf16.mxu0 0
        %606 = vmatpush1.bf16.msra.mxu0 0
        %607 = vmatprep.subr.bf16.mxu0 0
        %608 = vmatpush1.bf16.msra.mxu0 0
        %609 = vmatprep.subr.bf16.mxu0 0
        %610 = vmatpush1.bf16.msra.mxu0 0
        %611 = vmatprep.subr.bf16.mxu0 0
        %612 = vmatpush1.bf16.msra.mxu0 0
        %613 = vmatprep.subr.bf16.mxu0 0
        %614 = vmatpush1.bf16.msra.mxu0 0
        %615 = vmatprep.subr.bf16.mxu0 0
        %616 = vmatpush1.bf16.msra.mxu0 0
        %617 = vmatprep.subr.bf16.mxu0 0
        %618 = vmatpush1.bf16.msra.mxu0 0
        %619 = vmatprep.subr.bf16.mxu0 0
        %620 = vmatpush1.bf16.msra.mxu0 0
        %621 = vmatprep.subr.bf16.mxu0 0
        %622 = vmatpush1.bf16.msra.mxu0 0
        %623 = vmatprep.subr.bf16.mxu0 0
        %624 = vmatpush1.bf16.msra.mxu0 0
        %625 = vmatprep.subr.bf16.mxu0 0
        %626 = vmatpush1.bf16.msra.mxu0 0
        %627 = vmatprep.subr.bf16.mxu0 0
        %628 = vmatpush1.bf16.msra.mxu0 0
        %629 = vmatprep.mubr.bf16.mxu0 0
        %630 = vmatmul.mubr.bf16.gmra.mrb[0].mxu0 %v589
        %v631 = vpop.f32.mrb[0].mxu0
        %v632 = vadd.f32 0.0, %v631
        %v633 = vpop.f32.mrb[0].mxu0
        %v634 = vadd.f32 0.0, %v633
        %v635 = vpop.f32.mrb[0].mxu0
        %v636 = vpop.f32.mrb[0].mxu0
        %637 = vdwg.mxu0
        %v638 = vadd.f32 %v563, %v632
        %v639 = vadd.f32 %v564, %v634
        %640 = vrot.lane.b32.xlu0 %v251, 127
        %v641 = vpop.permute.xlu0 %640
        %642 = vrot.lane.b32.xlu0 %v253, 127
        %v643 = vpop.permute.xlu0 %642
        %vm644 = vcmp.lt.s32.totalorder %v260, 127
        %v645 = vsel %vm644, %v641, %v643
        %v646 = vsel %vm644, %v643, %v641
        %s647 = scalar_lea.vmem %s5, 5
        %v648 = vld [vmem:[%s647] ss:$8 sm:$0x3]
        %v650 = vlaneseq
        %v651 = vshrl.u32 %v650, 7
        %v652 = vsub.s32 0, %v651
        %v653 = vrot.slane %v648, %v652
        %v654 = vlaneseq
        %v655 = vshrl.u32 %v654, 7
        %v656 = vsub.s32 1, %v655
        %v657 = vrot.slane %v648, %v656
        %v660 = vmul.f32 %v645, %v653
        %v661 = vmul.f32 %v646, %v657
        %s662 = scalar_lea.vmem %s1, 10
        %v663 = vld [vmem:[%s662] sm:$0x3]
        %v664 = vpack.c.bf16 %v660, %v660
        %v665 = vpack.c.bf16 %v661, %v661
        %v667 = vsel %vm307, %v663, 0
        %v670 = vsel %vm311, %v664, 0
        %v673 = vsel %vm311, %v665, 0
        %675 = vmatprep.subr.bf16.mxu0 %v673
        %676 = vmatpush1.bf16.msra.mxu0 %v670
        %677 = vmatprep.subr.bf16.mxu0 0
        %678 = vmatpush1.bf16.msra.mxu0 0
        %679 = vmatprep.subr.bf16.mxu0 0
        %680 = vmatpush1.bf16.msra.mxu0 0
        %681 = vmatprep.subr.bf16.mxu0 0
        %682 = vmatpush1.bf16.msra.mxu0 0
        %683 = vmatprep.subr.bf16.mxu0 0
        %684 = vmatpush1.bf16.msra.mxu0 0
        %685 = vmatprep.subr.bf16.mxu0 0
        %686 = vmatpush1.bf16.msra.mxu0 0
        %687 = vmatprep.subr.bf16.mxu0 0
        %688 = vmatpush1.bf16.msra.mxu0 0
        %689 = vmatprep.subr.bf16.mxu0 0
        %690 = vmatpush1.bf16.msra.mxu0 0
        %691 = vmatprep.subr.bf16.mxu0 0
        %692 = vmatpush1.bf16.msra.mxu0 0
        %693 = vmatprep.subr.bf16.mxu0 0
        %694 = vmatpush1.bf16.msra.mxu0 0
        %695 = vmatprep.subr.bf16.mxu0 0
        %696 = vmatpush1.bf16.msra.mxu0 0
        %697 = vmatprep.subr.bf16.mxu0 0
        %698 = vmatpush1.bf16.msra.mxu0 0
        %699 = vmatprep.subr.bf16.mxu0 0
        %700 = vmatpush1.bf16.msra.mxu0 0
        %701 = vmatprep.subr.bf16.mxu0 0
        %702 = vmatpush1.bf16.msra.mxu0 0
        %703 = vmatprep.subr.bf16.mxu0 0
        %704 = vmatpush1.bf16.msra.mxu0 0
        %705 = vmatprep.subr.bf16.mxu0 0
        %706 = vmatpush1.bf16.msra.mxu0 0
        %707 = vmatprep.mubr.bf16.mxu0 0
        %708 = vmatmul.mubr.bf16.gmra.mrb[0].mxu0 %v667
        %v709 = vpop.f32.mrb[0].mxu0
        %v710 = vadd.f32 0.0, %v709
        %v711 = vpop.f32.mrb[0].mxu0
        %v712 = vadd.f32 0.0, %v711
        %v713 = vpop.f32.mrb[0].mxu0
        %v714 = vpop.f32.mrb[0].mxu0
        %715 = vdwg.mxu0
        %v716 = vadd.f32 %v638, %v710
        %v717 = vadd.f32 %v639, %v712
        %718 = vrot.lane.b32.xlu0 %v251, 113
        %v719 = vpop.permute.xlu0 %718
        %720 = vrot.lane.b32.xlu0 %v253, 113
        %v721 = vpop.permute.xlu0 %720
        %vm722 = vcmp.lt.s32.totalorder %v260, 113
        %v723 = vsel %vm722, %v719, %v721
        %v724 = vsel %vm722, %v721, %v719
        %s725 = scalar_lea.vmem %s5, 6
        %v726 = vld [vmem:[%s725] ss:$8 sm:$0x3]
        %v728 = vlaneseq
        %v729 = vshrl.u32 %v728, 7
        %v730 = vsub.s32 0, %v729
        %v731 = vrot.slane %v726, %v730
        %v732 = vlaneseq
        %v733 = vshrl.u32 %v732, 7
        %v734 = vsub.s32 1, %v733
        %v735 = vrot.slane %v726, %v734
        %v738 = vmul.f32 %v723, %v731
        %v739 = vmul.f32 %v724, %v735
        %s740 = scalar_lea.vmem %s1, 12
        %v741 = vld [vmem:[%s740] sm:$0x3]
        %v742 = vpack.c.bf16 %v738, %v738
        %v743 = vpack.c.bf16 %v739, %v739
        %v745 = vsel %vm307, %v741, 0
        %v748 = vsel %vm311, %v742, 0
        %v751 = vsel %vm311, %v743, 0
        %753 = vmatprep.subr.bf16.mxu0 %v751
        %754 = vmatpush1.bf16.msra.mxu0 %v748
        %755 = vmatprep.subr.bf16.mxu0 0
        %756 = vmatpush1.bf16.msra.mxu0 0
        %757 = vmatprep.subr.bf16.mxu0 0
        %758 = vmatpush1.bf16.msra.mxu0 0
        %759 = vmatprep.subr.bf16.mxu0 0
        %760 = vmatpush1.bf16.msra.mxu0 0
        %761 = vmatprep.subr.bf16.mxu0 0
        %762 = vmatpush1.bf16.msra.mxu0 0
        %763 = vmatprep.subr.bf16.mxu0 0
        %764 = vmatpush1.bf16.msra.mxu0 0
        %765 = vmatprep.subr.bf16.mxu0 0
        %766 = vmatpush1.bf16.msra.mxu0 0
        %767 = vmatprep.subr.bf16.mxu0 0
        %768 = vmatpush1.bf16.msra.mxu0 0
        %769 = vmatprep.subr.bf16.mxu0 0
        %770 = vmatpush1.bf16.msra.mxu0 0
        %771 = vmatprep.subr.bf16.mxu0 0
        %772 = vmatpush1.bf16.msra.mxu0 0
        %773 = vmatprep.subr.bf16.mxu0 0
        %774 = vmatpush1.bf16.msra.mxu0 0
        %775 = vmatprep.subr.bf16.mxu0 0
        %776 = vmatpush1.bf16.msra.mxu0 0
        %777 = vmatprep.subr.bf16.mxu0 0
        %778 = vmatpush1.bf16.msra.mxu0 0
        %779 = vmatprep.subr.bf16.mxu0 0
        %780 = vmatpush1.bf16.msra.mxu0 0
        %781 = vmatprep.subr.bf16.mxu0 0
        %782 = vmatpush1.bf16.msra.mxu0 0
        %783 = vmatprep.subr.bf16.mxu0 0
        %784 = vmatpush1.bf16.msra.mxu0 0
        %785 = vmatprep.mubr.bf16.mxu0 0
        %786 = vmatmul.mubr.bf16.gmra.mrb[0].mxu0 %v745
        %v787 = vpop.f32.mrb[0].mxu0
        %v788 = vadd.f32 0.0, %v787
        %v789 = vpop.f32.mrb[0].mxu0
        %v790 = vadd.f32 0.0, %v789
        %v791 = vpop.f32.mrb[0].mxu0
        %v792 = vpop.f32.mrb[0].mxu0
        %793 = vdwg.mxu0
        %v794 = vadd.f32 %v716, %v788
        %v795 = vadd.f32 %v717, %v790
        %796 = vrot.lane.b32.xlu0 %v251, 112
        %v797 = vpop.permute.xlu0 %796
        %798 = vrot.lane.b32.xlu0 %v253, 112
        %v799 = vpop.permute.xlu0 %798
        %vm800 = vcmp.lt.s32.totalorder %v260, 112
        %v801 = vsel %vm800, %v797, %v799
        %v802 = vsel %vm800, %v799, %v797
        %s803 = scalar_lea.vmem %s5, 7
        %v804 = vld [vmem:[%s803] ss:$8 sm:$0x3]
        %v806 = vlaneseq
        %v807 = vshrl.u32 %v806, 7
        %v808 = vsub.s32 0, %v807
        %v809 = vrot.slane %v804, %v808
        %v810 = vlaneseq
        %v811 = vshrl.u32 %v810, 7
        %v812 = vsub.s32 1, %v811
        %v813 = vrot.slane %v804, %v812
        %v816 = vmul.f32 %v801, %v809
        %v817 = vmul.f32 %v802, %v813
        %s818 = scalar_lea.vmem %s1, 14
        %v819 = vld [vmem:[%s818] sm:$0x3]
        %v820 = vpack.c.bf16 %v816, %v816
        %v821 = vpack.c.bf16 %v817, %v817
        %v823 = vsel %vm307, %v819, 0
        %v826 = vsel %vm311, %v820, 0
        %v829 = vsel %vm311, %v821, 0
        %831 = vmatprep.subr.bf16.mxu0 %v829
        %832 = vmatpush1.bf16.msra.mxu0 %v826
        %833 = vmatprep.subr.bf16.mxu0 0
        %834 = vmatpush1.bf16.msra.mxu0 0
        %835 = vmatprep.subr.bf16.mxu0 0
        %836 = vmatpush1.bf16.msra.mxu0 0
        %837 = vmatprep.subr.bf16.mxu0 0
        %838 = vmatpush1.bf16.msra.mxu0 0
        %839 = vmatprep.subr.bf16.mxu0 0
        %840 = vmatpush1.bf16.msra.mxu0 0
        %841 = vmatprep.subr.bf16.mxu0 0
        %842 = vmatpush1.bf16.msra.mxu0 0
        %843 = vmatprep.subr.bf16.mxu0 0
        %844 = vmatpush1.bf16.msra.mxu0 0
        %845 = vmatprep.subr.bf16.mxu0 0
        %846 = vmatpush1.bf16.msra.mxu0 0
        %847 = vmatprep.subr.bf16.mxu0 0
        %848 = vmatpush1.bf16.msra.mxu0 0
        %849 = vmatprep.subr.bf16.mxu0 0
        %850 = vmatpush1.bf16.msra.mxu0 0
        %851 = vmatprep.subr.bf16.mxu0 0
        %852 = vmatpush1.bf16.msra.mxu0 0
        %853 = vmatprep.subr.bf16.mxu0 0
        %854 = vmatpush1.bf16.msra.mxu0 0
        %855 = vmatprep.subr.bf16.mxu0 0
        %856 = vmatpush1.bf16.msra.mxu0 0
        %857 = vmatprep.subr.bf16.mxu0 0
        %858 = vmatpush1.bf16.msra.mxu0 0
        %859 = vmatprep.subr.bf16.mxu0 0
        %860 = vmatpush1.bf16.msra.mxu0 0
        %861 = vmatprep.subr.bf16.mxu0 0
        %862 = vmatpush1.bf16.msra.mxu0 0
        %863 = vmatprep.mubr.bf16.mxu0 0
        %864 = vmatmul.mubr.bf16.gmra.mrb[0].mxu0 %v823
        %v865 = vpop.f32.mrb[0].mxu0
        %v866 = vadd.f32 0.0, %v865
        %v867 = vpop.f32.mrb[0].mxu0
        %v868 = vadd.f32 0.0, %v867
        %v869 = vpop.f32.mrb[0].mxu0
        %v870 = vpop.f32.mrb[0].mxu0
        %871 = vdwg.mxu0
        %v872 = vadd.f32 %v794, %v866
        %v873 = vadd.f32 %v795, %v868
        %874 = vrot.lane.b32.xlu0 %v251, 111
        %v875 = vpop.permute.xlu0 %874
        %876 = vrot.lane.b32.xlu0 %v253, 111
        %v877 = vpop.permute.xlu0 %876
        %vm878 = vcmp.lt.s32.totalorder %v260, 111
        %v879 = vsel %vm878, %v875, %v877
        %v880 = vsel %vm878, %v877, %v875
        %s881 = scalar_lea.vmem %s5, 16
        %v882 = vld [vmem:[%s881] ss:$8 sm:$0x3]
        %v884 = vlaneseq
        %v885 = vshrl.u32 %v884, 7
        %v886 = vsub.s32 0, %v885
        %v887 = vrot.slane %v882, %v886
        %v888 = vlaneseq
        %v889 = vshrl.u32 %v888, 7
        %v890 = vsub.s32 1, %v889
        %v891 = vrot.slane %v882, %v890
        %v894 = vmul.f32 %v879, %v887
        %v895 = vmul.f32 %v880, %v891
        %s896 = scalar_lea.vmem %s1, 16
        %v897 = vld [vmem:[%s896] sm:$0x3]
        %v898 = vpack.c.bf16 %v894, %v894
        %v899 = vpack.c.bf16 %v895, %v895
        %v901 = vsel %vm307, %v897, 0
        %v904 = vsel %vm311, %v898, 0
        %v907 = vsel %vm311, %v899, 0
        %909 = vmatprep.subr.bf16.mxu0 %v907
        %910 = vmatpush1.bf16.msra.mxu0 %v904
        %911 = vmatprep.subr.bf16.mxu0 0
        %912 = vmatpush1.bf16.msra.mxu0 0
        %913 = vmatprep.subr.bf16.mxu0 0
        %914 = vmatpush1.bf16.msra.mxu0 0
        %915 = vmatprep.subr.bf16.mxu0 0
        %916 = vmatpush1.bf16.msra.mxu0 0
        %917 = vmatprep.subr.bf16.mxu0 0
        %918 = vmatpush1.bf16.msra.mxu0 0
        %919 = vmatprep.subr.bf16.mxu0 0
        %920 = vmatpush1.bf16.msra.mxu0 0
        %921 = vmatprep.subr.bf16.mxu0 0
        %922 = vmatpush1.bf16.msra.mxu0 0
        %923 = vmatprep.subr.bf16.mxu0 0
        %924 = vmatpush1.bf16.msra.mxu0 0
        %925 = vmatprep.subr.bf16.mxu0 0
        %926 = vmatpush1.bf16.msra.mxu0 0
        %927 = vmatprep.subr.bf16.mxu0 0
        %928 = vmatpush1.bf16.msra.mxu0 0
        %929 = vmatprep.subr.bf16.mxu0 0
        %930 = vmatpush1.bf16.msra.mxu0 0
        %931 = vmatprep.subr.bf16.mxu0 0
        %932 = vmatpush1.bf16.msra.mxu0 0
        %933 = vmatprep.subr.bf16.mxu0 0
        %934 = vmatpush1.bf16.msra.mxu0 0
        %935 = vmatprep.subr.bf16.mxu0 0
        %936 = vmatpush1.bf16.msra.mxu0 0
        %937 = vmatprep.subr.bf16.mxu0 0
        %938 = vmatpush1.bf16.msra.mxu0 0
        %939 = vmatprep.subr.bf16.mxu0 0
        %940 = vmatpush1.bf16.msra.mxu0 0
        %941 = vmatprep.mubr.bf16.mxu0 0
        %942 = vmatmul.mubr.bf16.gmra.mrb[0].mxu0 %v901
        %v943 = vpop.f32.mrb[0].mxu0
        %v944 = vadd.f32 0.0, %v943
        %v945 = vpop.f32.mrb[0].mxu0
        %v946 = vadd.f32 0.0, %v945
        %v947 = vpop.f32.mrb[0].mxu0
        %v948 = vpop.f32.mrb[0].mxu0
        %949 = vdwg.mxu0
        %v950 = vadd.f32 %v872, %v944
        %v951 = vadd.f32 %v873, %v946
        %v952 = vld [vmem:[%s2] sm:$0xf]
        %954 = vset.pattern.permute.xlu0 0
        %955 = vperm.xlu0 %954, %v952
        %v956 = vpop.permute.xlu0 %955
        %v958 = vadd.f32 %v950, %v956
        %v959 = vadd.f32 %v951, %v956
        %v960 = vmax.f32 %v958, 0.0
        %v961 = vmax.f32 %v959, 0.0
        %962 = vrot.lane.b32.xlu0 %v960, 17
        %v963 = vpop.permute.xlu0 %962
        %964 = vrot.lane.b32.xlu0 %v961, 17
        %v965 = vpop.permute.xlu0 %964
        %v966 = vsel %vm261, %v963, %v965
        %v967 = vsel %vm261, %v965, %v963
        %v968 = vmul.f32 %v967, %v269
        %v969 = vmul.f32 %v966, %v273
        %v970 = vld [vmem:[%s3] sm:$0x3]
        %v971 = vpack.c.bf16 %v968, %v968
        %v972 = vpack.c.bf16 %v969, %v969
        %973 = vrot.lane.b32.xlu0 %v960, 16
        %v974 = vpop.permute.xlu0 %973
        %975 = vrot.lane.b32.xlu0 %v961, 16
        %v976 = vpop.permute.xlu0 %975
        %v977 = vsel %vm285, %v974, %v976
        %v978 = vsel %vm285, %v976, %v974
        %v979 = vmul.f32 %v978, %v294
        %v980 = vmul.f32 %v977, %v298
        %s981 = scalar_lea.vmem %s3, 2
        %v982 = vld [vmem:[%s981] sm:$0x3]
        %v983 = vpack.c.bf16 %v979, %v979
        %v984 = vpack.c.bf16 %v980, %v980
        %v986 = vsel %vm307, %v982, 0
        %v989 = vsel %vm311, %v983, 0
        %v992 = vsel %vm311, %v984, 0
        %994 = vmatprep.subr.bf16.mxu0 %v992
        %995 = vmatpush1.bf16.msra.mxu0 %v989
        %996 = vmatprep.subr.bf16.mxu0 0
        %997 = vmatpush1.bf16.msra.mxu0 0
        %998 = vmatprep.subr.bf16.mxu0 0
        %999 = vmatpush1.bf16.msra.mxu0 0
        %1000 = vmatprep.subr.bf16.mxu0 0
        %1001 = vmatpush1.bf16.msra.mxu0 0
        %1002 = vmatprep.subr.bf16.mxu0 0
        %1003 = vmatpush1.bf16.msra.mxu0 0
        %1004 = vmatprep.subr.bf16.mxu0 0
        %1005 = vmatpush1.bf16.msra.mxu0 0
        %1006 = vmatprep.subr.bf16.mxu0 0
        %1007 = vmatpush1.bf16.msra.mxu0 0
        %1008 = vmatprep.subr.bf16.mxu0 0
        %1009 = vmatpush1.bf16.msra.mxu0 0
        %1010 = vmatprep.subr.bf16.mxu0 0
        %1011 = vmatpush1.bf16.msra.mxu0 0
        %1012 = vmatprep.subr.bf16.mxu0 0
        %1013 = vmatpush1.bf16.msra.mxu0 0
        %1014 = vmatprep.subr.bf16.mxu0 0
        %1015 = vmatpush1.bf16.msra.mxu0 0
        %1016 = vmatprep.subr.bf16.mxu0 0
        %1017 = vmatpush1.bf16.msra.mxu0 0
        %1018 = vmatprep.subr.bf16.mxu0 0
        %1019 = vmatpush1.bf16.msra.mxu0 0
        %1020 = vmatprep.subr.bf16.mxu0 0
        %1021 = vmatpush1.bf16.msra.mxu0 0
        %1022 = vmatprep.subr.bf16.mxu0 0
        %1023 = vmatpush1.bf16.msra.mxu0 0
        %1024 = vmatprep.subr.bf16.mxu0 0
        %1025 = vmatpush1.bf16.msra.mxu0 0
        %1026 = vmatprep.mubr.bf16.mxu0 0
        %1027 = vmatmul.mubr.bf16.gmra.mrb[0].mxu0 %v986
        %v1028 = vpop.f32.mrb[0].mxu0
        %v1029 = vadd.f32 0.0, %v1028
        %v1030 = vpop.f32.mrb[0].mxu0
        %v1031 = vadd.f32 0.0, %v1030
        %v1032 = vpop.f32.mrb[0].mxu0
        %v1033 = vpop.f32.mrb[0].mxu0
        %1034 = vdwg.mxu0
        %v1036 = vsel %vm307, %v970, 0
        %v1039 = vsel %vm311, %v971, 0
        %v1042 = vsel %vm311, %v972, 0
        %1044 = vmatprep.subr.bf16.mxu0 %v1042
        %1045 = vmatpush1.bf16.msra.mxu0 %v1039
        %1046 = vmatprep.subr.bf16.mxu0 0
        %1047 = vmatpush1.bf16.msra.mxu0 0
        %1048 = vmatprep.subr.bf16.mxu0 0
        %1049 = vmatpush1.bf16.msra.mxu0 0
        %1050 = vmatprep.subr.bf16.mxu0 0
        %1051 = vmatpush1.bf16.msra.mxu0 0
        %1052 = vmatprep.subr.bf16.mxu0 0
        %1053 = vmatpush1.bf16.msra.mxu0 0
        %1054 = vmatprep.subr.bf16.mxu0 0
        %1055 = vmatpush1.bf16.msra.mxu0 0
        %1056 = vmatprep.subr.bf16.mxu0 0
        %1057 = vmatpush1.bf16.msra.mxu0 0
        %1058 = vmatprep.subr.bf16.mxu0 0
        %1059 = vmatpush1.bf16.msra.mxu0 0
        %1060 = vmatprep.subr.bf16.mxu0 0
        %1061 = vmatpush1.bf16.msra.mxu0 0
        %1062 = vmatprep.subr.bf16.mxu0 0
        %1063 = vmatpush1.bf16.msra.mxu0 0
        %1064 = vmatprep.subr.bf16.mxu0 0
        %1065 = vmatpush1.bf16.msra.mxu0 0
        %1066 = vmatprep.subr.bf16.mxu0 0
        %1067 = vmatpush1.bf16.msra.mxu0 0
        %1068 = vmatprep.subr.bf16.mxu0 0
        %1069 = vmatpush1.bf16.msra.mxu0 0
        %1070 = vmatprep.subr.bf16.mxu0 0
        %1071 = vmatpush1.bf16.msra.mxu0 0
        %1072 = vmatprep.subr.bf16.mxu0 0
        %1073 = vmatpush1.bf16.msra.mxu0 0
        %1074 = vmatprep.subr.bf16.mxu0 0
        %1075 = vmatpush1.bf16.msra.mxu0 0
        %1076 = vmatprep.mubr.bf16.mxu0 0
        %1077 = vmatmul.mubr.bf16.gmra.mrb[0].mxu0 %v1036
        %v1078 = vpop.f32.mrb[0].mxu0
        %v1079 = vadd.f32 %v1029, %v1078
        %v1080 = vpop.f32.mrb[0].mxu0
        %v1081 = vadd.f32 %v1031, %v1080
        %v1082 = vpop.f32.mrb[0].mxu0
        %v1083 = vpop.f32.mrb[0].mxu0
        %1084 = vdwg.mxu0
        %1085 = vrot.lane.b32.xlu0 %v960, 15
        %v1086 = vpop.permute.xlu0 %1085
        %1087 = vrot.lane.b32.xlu0 %v961, 15
        %v1088 = vpop.permute.xlu0 %1087
        %v1089 = vsel %vm413, %v1086, %v1088
        %v1090 = vsel %vm413, %v1088, %v1086
        %v1091 = vmul.f32 %v1090, %v422
        %v1092 = vmul.f32 %v1089, %v426
        %s1093 = scalar_lea.vmem %s3, 4
        %v1094 = vld [vmem:[%s1093] sm:$0x3]
        %v1095 = vpack.c.bf16 %v1091, %v1091
        %v1096 = vpack.c.bf16 %v1092, %v1092
        %v1098 = vsel %vm307, %v1094, 0
        %v1101 = vsel %vm311, %v1095, 0
        %v1104 = vsel %vm311, %v1096, 0
        %1106 = vmatprep.subr.bf16.mxu0 %v1104
        %1107 = vmatpush1.bf16.msra.mxu0 %v1101
        %1108 = vmatprep.subr.bf16.mxu0 0
        %1109 = vmatpush1.bf16.msra.mxu0 0
        %1110 = vmatprep.subr.bf16.mxu0 0
        %1111 = vmatpush1.bf16.msra.mxu0 0
        %1112 = vmatprep.subr.bf16.mxu0 0
        %1113 = vmatpush1.bf16.msra.mxu0 0
        %1114 = vmatprep.subr.bf16.mxu0 0
        %1115 = vmatpush1.bf16.msra.mxu0 0
        %1116 = vmatprep.subr.bf16.mxu0 0
        %1117 = vmatpush1.bf16.msra.mxu0 0
        %1118 = vmatprep.subr.bf16.mxu0 0
        %1119 = vmatpush1.bf16.msra.mxu0 0
        %1120 = vmatprep.subr.bf16.mxu0 0
        %1121 = vmatpush1.bf16.msra.mxu0 0
        %1122 = vmatprep.subr.bf16.mxu0 0
        %1123 = vmatpush1.bf16.msra.mxu0 0
        %1124 = vmatprep.subr.bf16.mxu0 0
        %1125 = vmatpush1.bf16.msra.mxu0 0
        %1126 = vmatprep.subr.bf16.mxu0 0
        %1127 = vmatpush1.bf16.msra.mxu0 0
        %1128 = vmatprep.subr.bf16.mxu0 0
        %1129 = vmatpush1.bf16.msra.mxu0 0
        %1130 = vmatprep.subr.bf16.mxu0 0
        %1131 = vmatpush1.bf16.msra.mxu0 0
        %1132 = vmatprep.subr.bf16.mxu0 0
        %1133 = vmatpush1.bf16.msra.mxu0 0
        %1134 = vmatprep.subr.bf16.mxu0 0
        %1135 = vmatpush1.bf16.msra.mxu0 0
        %1136 = vmatprep.subr.bf16.mxu0 0
        %1137 = vmatpush1.bf16.msra.mxu0 0
        %1138 = vmatprep.mubr.bf16.mxu0 0
        %1139 = vmatmul.mubr.bf16.gmra.mrb[0].mxu0 %v1098
        %v1140 = vpop.f32.mrb[0].mxu0
        %v1141 = vadd.f32 0.0, %v1140
        %v1142 = vpop.f32.mrb[0].mxu0
        %v1143 = vadd.f32 0.0, %v1142
        %v1144 = vpop.f32.mrb[0].mxu0
        %v1145 = vpop.f32.mrb[0].mxu0
        %1146 = vdwg.mxu0
        %v1147 = vadd.f32 %v1079, %v1141
        %v1148 = vadd.f32 %v1081, %v1143
        %1149 = vrot.lane.b32.xlu0 %v960, 1
        %v1150 = vpop.permute.xlu0 %1149
        %1151 = vrot.lane.b32.xlu0 %v961, 1
        %v1152 = vpop.permute.xlu0 %1151
        %v1153 = vsel %vm491, %v1150, %v1152
        %v1154 = vsel %vm491, %v1152, %v1150
        %v1155 = vmul.f32 %v1154, %v500
        %v1156 = vmul.f32 %v1153, %v504
        %s1157 = scalar_lea.vmem %s3, 6
        %v1158 = vld [vmem:[%s1157] sm:$0x3]
        %v1159 = vpack.c.bf16 %v1155, %v1155
        %v1160 = vpack.c.bf16 %v1156, %v1156
        %v1162 = vsel %vm307, %v1158, 0
        %v1165 = vsel %vm311, %v1159, 0
        %v1168 = vsel %vm311, %v1160, 0
        %1170 = vmatprep.subr.bf16.mxu0 %v1168
        %1171 = vmatpush1.bf16.msra.mxu0 %v1165
        %1172 = vmatprep.subr.bf16.mxu0 0
        %1173 = vmatpush1.bf16.msra.mxu0 0
        %1174 = vmatprep.subr.bf16.mxu0 0
        %1175 = vmatpush1.bf16.msra.mxu0 0
        %1176 = vmatprep.subr.bf16.mxu0 0
        %1177 = vmatpush1.bf16.msra.mxu0 0
        %1178 = vmatprep.subr.bf16.mxu0 0
        %1179 = vmatpush1.bf16.msra.mxu0 0
        %1180 = vmatprep.subr.bf16.mxu0 0
        %1181 = vmatpush1.bf16.msra.mxu0 0
        %1182 = vmatprep.subr.bf16.mxu0 0
        %1183 = vmatpush1.bf16.msra.mxu0 0
        %1184 = vmatprep.subr.bf16.mxu0 0
        %1185 = vmatpush1.bf16.msra.mxu0 0
        %1186 = vmatprep.subr.bf16.mxu0 0
        %1187 = vmatpush1.bf16.msra.mxu0 0
        %1188 = vmatprep.subr.bf16.mxu0 0
        %1189 = vmatpush1.bf16.msra.mxu0 0
        %1190 = vmatprep.subr.bf16.mxu0 0
        %1191 = vmatpush1.bf16.msra.mxu0 0
        %1192 = vmatprep.subr.bf16.mxu0 0
        %1193 = vmatpush1.bf16.msra.mxu0 0
        %1194 = vmatprep.subr.bf16.mxu0 0
        %1195 = vmatpush1.bf16.msra.mxu0 0
        %1196 = vmatprep.subr.bf16.mxu0 0
        %1197 = vmatpush1.bf16.msra.mxu0 0
        %1198 = vmatprep.subr.bf16.mxu0 0
        %1199 = vmatpush1.bf16.msra.mxu0 0
        %1200 = vmatprep.subr.bf16.mxu0 0
        %1201 = vmatpush1.bf16.msra.mxu0 0
        %1202 = vmatprep.mubr.bf16.mxu0 0
        %1203 = vmatmul.mubr.bf16.gmra.mrb[0].mxu0 %v1162
        %v1204 = vpop.f32.mrb[0].mxu0
        %v1205 = vadd.f32 0.0, %v1204
        %v1206 = vpop.f32.mrb[0].mxu0
        %v1207 = vadd.f32 0.0, %v1206
        %v1208 = vpop.f32.mrb[0].mxu0
        %v1209 = vpop.f32.mrb[0].mxu0
        %1210 = vdwg.mxu0
        %v1211 = vadd.f32 %v1147, %v1205
        %v1212 = vadd.f32 %v1148, %v1207
        %v1213 = vmul.f32 %v960, %v571
        %v1214 = vmul.f32 %v961, %v575
        %s1215 = scalar_lea.vmem %s3, 8
        %v1216 = vld [vmem:[%s1215] sm:$0x3]
        %v1217 = vpack.c.bf16 %v1213, %v1213
        %v1218 = vpack.c.bf16 %v1214, %v1214
        %v1220 = vsel %vm307, %v1216, 0
        %v1223 = vsel %vm311, %v1217, 0
        %v1226 = vsel %vm311, %v1218, 0
        %1228 = vmatprep.subr.bf16.mxu0 %v1226
        %1229 = vmatpush1.bf16.msra.mxu0 %v1223
        %1230 = vmatprep.subr.bf16.mxu0 0
        %1231 = vmatpush1.bf16.msra.mxu0 0
        %1232 = vmatprep.subr.bf16.mxu0 0
        %1233 = vmatpush1.bf16.msra.mxu0 0
        %1234 = vmatprep.subr.bf16.mxu0 0
        %1235 = vmatpush1.bf16.msra.mxu0 0
        %1236 = vmatprep.subr.bf16.mxu0 0
        %1237 = vmatpush1.bf16.msra.mxu0 0
        %1238 = vmatprep.subr.bf16.mxu0 0
        %1239 = vmatpush1.bf16.msra.mxu0 0
        %1240 = vmatprep.subr.bf16.mxu0 0
        %1241 = vmatpush1.bf16.msra.mxu0 0
        %1242 = vmatprep.subr.bf16.mxu0 0
        %1243 = vmatpush1.bf16.msra.mxu0 0
        %1244 = vmatprep.subr.bf16.mxu0 0
        %1245 = vmatpush1.bf16.msra.mxu0 0
        %1246 = vmatprep.subr.bf16.mxu0 0
        %1247 = vmatpush1.bf16.msra.mxu0 0
        %1248 = vmatprep.subr.bf16.mxu0 0
        %1249 = vmatpush1.bf16.msra.mxu0 0
        %1250 = vmatprep.subr.bf16.mxu0 0
        %1251 = vmatpush1.bf16.msra.mxu0 0
        %1252 = vmatprep.subr.bf16.mxu0 0
        %1253 = vmatpush1.bf16.msra.mxu0 0
        %1254 = vmatprep.subr.bf16.mxu0 0
        %1255 = vmatpush1.bf16.msra.mxu0 0
        %1256 = vmatprep.subr.bf16.mxu0 0
        %1257 = vmatpush1.bf16.msra.mxu0 0
        %1258 = vmatprep.subr.bf16.mxu0 0
        %1259 = vmatpush1.bf16.msra.mxu0 0
        %1260 = vmatprep.mubr.bf16.mxu0 0
        %1261 = vmatmul.mubr.bf16.gmra.mrb[0].mxu0 %v1220
        %v1262 = vpop.f32.mrb[0].mxu0
        %v1263 = vadd.f32 0.0, %v1262
        %v1264 = vpop.f32.mrb[0].mxu0
        %v1265 = vadd.f32 0.0, %v1264
        %v1266 = vpop.f32.mrb[0].mxu0
        %v1267 = vpop.f32.mrb[0].mxu0
        %1268 = vdwg.mxu0
        %v1269 = vadd.f32 %v1211, %v1263
        %v1270 = vadd.f32 %v1212, %v1265
        %1271 = vrot.lane.b32.xlu0 %v960, 127
        %v1272 = vpop.permute.xlu0 %1271
        %1273 = vrot.lane.b32.xlu0 %v961, 127
        %v1274 = vpop.permute.xlu0 %1273
        %v1275 = vsel %vm644, %v1272, %v1274
        %v1276 = vsel %vm644, %v1274, %v1272
        %v1277 = vmul.f32 %v1275, %v653
        %v1278 = vmul.f32 %v1276, %v657
        %s1279 = scalar_lea.vmem %s3, 10
        %v1280 = vld [vmem:[%s1279] sm:$0x3]
        %v1281 = vpack.c.bf16 %v1277, %v1277
        %v1282 = vpack.c.bf16 %v1278, %v1278
        %v1284 = vsel %vm307, %v1280, 0
        %v1287 = vsel %vm311, %v1281, 0
        %v1290 = vsel %vm311, %v1282, 0
        %1292 = vmatprep.subr.bf16.mxu0 %v1290
        %1293 = vmatpush1.bf16.msra.mxu0 %v1287
        %1294 = vmatprep.subr.bf16.mxu0 0
        %1295 = vmatpush1.bf16.msra.mxu0 0
        %1296 = vmatprep.subr.bf16.mxu0 0
        %1297 = vmatpush1.bf16.msra.mxu0 0
        %1298 = vmatprep.subr.bf16.mxu0 0
        %1299 = vmatpush1.bf16.msra.mxu0 0
        %1300 = vmatprep.subr.bf16.mxu0 0
        %1301 = vmatpush1.bf16.msra.mxu0 0
        %1302 = vmatprep.subr.bf16.mxu0 0
        %1303 = vmatpush1.bf16.msra.mxu0 0
        %1304 = vmatprep.subr.bf16.mxu0 0
        %1305 = vmatpush1.bf16.msra.mxu0 0
        %1306 = vmatprep.subr.bf16.mxu0 0
        %1307 = vmatpush1.bf16.msra.mxu0 0
        %1308 = vmatprep.subr.bf16.mxu0 0
        %1309 = vmatpush1.bf16.msra.mxu0 0
        %1310 = vmatprep.subr.bf16.mxu0 0
        %1311 = vmatpush1.bf16.msra.mxu0 0
        %1312 = vmatprep.subr.bf16.mxu0 0
        %1313 = vmatpush1.bf16.msra.mxu0 0
        %1314 = vmatprep.subr.bf16.mxu0 0
        %1315 = vmatpush1.bf16.msra.mxu0 0
        %1316 = vmatprep.subr.bf16.mxu0 0
        %1317 = vmatpush1.bf16.msra.mxu0 0
        %1318 = vmatprep.subr.bf16.mxu0 0
        %1319 = vmatpush1.bf16.msra.mxu0 0
        %1320 = vmatprep.subr.bf16.mxu0 0
        %1321 = vmatpush1.bf16.msra.mxu0 0
        %1322 = vmatprep.subr.bf16.mxu0 0
        %1323 = vmatpush1.bf16.msra.mxu0 0
        %1324 = vmatprep.mubr.bf16.mxu0 0
        %1325 = vmatmul.mubr.bf16.gmra.mrb[0].mxu0 %v1284
        %v1326 = vpop.f32.mrb[0].mxu0
        %v1327 = vadd.f32 0.0, %v1326
        %v1328 = vpop.f32.mrb[0].mxu0
        %v1329 = vadd.f32 0.0, %v1328
        %v1330 = vpop.f32.mrb[0].mxu0
        %v1331 = vpop.f32.mrb[0].mxu0
        %1332 = vdwg.mxu0
        %v1333 = vadd.f32 %v1269, %v1327
        %v1334 = vadd.f32 %v1270, %v1329
        %1335 = vrot.lane.b32.xlu0 %v960, 113
        %v1336 = vpop.permute.xlu0 %1335
        %1337 = vrot.lane.b32.xlu0 %v961, 113
        %v1338 = vpop.permute.xlu0 %1337
        %v1339 = vsel %vm722, %v1336, %v1338
        %v1340 = vsel %vm722, %v1338, %v1336
        %v1341 = vmul.f32 %v1339, %v731
        %v1342 = vmul.f32 %v1340, %v735
        %s1343 = scalar_lea.vmem %s3, 12
        %v1344 = vld [vmem:[%s1343] sm:$0x3]
        %v1345 = vpack.c.bf16 %v1341, %v1341
        %v1346 = vpack.c.bf16 %v1342, %v1342
        %v1348 = vsel %vm307, %v1344, 0
        %v1351 = vsel %vm311, %v1345, 0
        %v1354 = vsel %vm311, %v1346, 0
        %1356 = vmatprep.subr.bf16.mxu0 %v1354
        %1357 = vmatpush1.bf16.msra.mxu0 %v1351
        %1358 = vmatprep.subr.bf16.mxu0 0
        %1359 = vmatpush1.bf16.msra.mxu0 0
        %1360 = vmatprep.subr.bf16.mxu0 0
        %1361 = vmatpush1.bf16.msra.mxu0 0
        %1362 = vmatprep.subr.bf16.mxu0 0
        %1363 = vmatpush1.bf16.msra.mxu0 0
        %1364 = vmatprep.subr.bf16.mxu0 0
        %1365 = vmatpush1.bf16.msra.mxu0 0
        %1366 = vmatprep.subr.bf16.mxu0 0
        %1367 = vmatpush1.bf16.msra.mxu0 0
        %1368 = vmatprep.subr.bf16.mxu0 0
        %1369 = vmatpush1.bf16.msra.mxu0 0
        %1370 = vmatprep.subr.bf16.mxu0 0
        %1371 = vmatpush1.bf16.msra.mxu0 0
        %1372 = vmatprep.subr.bf16.mxu0 0
        %1373 = vmatpush1.bf16.msra.mxu0 0
        %1374 = vmatprep.subr.bf16.mxu0 0
        %1375 = vmatpush1.bf16.msra.mxu0 0
        %1376 = vmatprep.subr.bf16.mxu0 0
        %1377 = vmatpush1.bf16.msra.mxu0 0
        %1378 = vmatprep.subr.bf16.mxu0 0
        %1379 = vmatpush1.bf16.msra.mxu0 0
        %1380 = vmatprep.subr.bf16.mxu0 0
        %1381 = vmatpush1.bf16.msra.mxu0 0
        %1382 = vmatprep.subr.bf16.mxu0 0
        %1383 = vmatpush1.bf16.msra.mxu0 0
        %1384 = vmatprep.subr.bf16.mxu0 0
        %1385 = vmatpush1.bf16.msra.mxu0 0
        %1386 = vmatprep.subr.bf16.mxu0 0
        %1387 = vmatpush1.bf16.msra.mxu0 0
        %1388 = vmatprep.mubr.bf16.mxu0 0
        %1389 = vmatmul.mubr.bf16.gmra.mrb[0].mxu0 %v1348
        %v1390 = vpop.f32.mrb[0].mxu0
        %v1391 = vadd.f32 0.0, %v1390
        %v1392 = vpop.f32.mrb[0].mxu0
        %v1393 = vadd.f32 0.0, %v1392
        %v1394 = vpop.f32.mrb[0].mxu0
        %v1395 = vpop.f32.mrb[0].mxu0
        %1396 = vdwg.mxu0
        %v1397 = vadd.f32 %v1333, %v1391
        %v1398 = vadd.f32 %v1334, %v1393
        %1399 = vrot.lane.b32.xlu0 %v960, 112
        %v1400 = vpop.permute.xlu0 %1399
        %1401 = vrot.lane.b32.xlu0 %v961, 112
        %v1402 = vpop.permute.xlu0 %1401
        %v1403 = vsel %vm800, %v1400, %v1402
        %v1404 = vsel %vm800, %v1402, %v1400
        %v1405 = vmul.f32 %v1403, %v809
        %v1406 = vmul.f32 %v1404, %v813
        %s1407 = scalar_lea.vmem %s3, 14
        %v1408 = vld [vmem:[%s1407] sm:$0x3]
        %v1409 = vpack.c.bf16 %v1405, %v1405
        %v1410 = vpack.c.bf16 %v1406, %v1406
        %v1412 = vsel %vm307, %v1408, 0
        %v1415 = vsel %vm311, %v1409, 0
        %v1418 = vsel %vm311, %v1410, 0
        %1420 = vmatprep.subr.bf16.mxu0 %v1418
        %1421 = vmatpush1.bf16.msra.mxu0 %v1415
        %1422 = vmatprep.subr.bf16.mxu0 0
        %1423 = vmatpush1.bf16.msra.mxu0 0
        %1424 = vmatprep.subr.bf16.mxu0 0
        %1425 = vmatpush1.bf16.msra.mxu0 0
        %1426 = vmatprep.subr.bf16.mxu0 0
        %1427 = vmatpush1.bf16.msra.mxu0 0
        %1428 = vmatprep.subr.bf16.mxu0 0
        %1429 = vmatpush1.bf16.msra.mxu0 0
        %1430 = vmatprep.subr.bf16.mxu0 0
        %1431 = vmatpush1.bf16.msra.mxu0 0
        %1432 = vmatprep.subr.bf16.mxu0 0
        %1433 = vmatpush1.bf16.msra.mxu0 0
        %1434 = vmatprep.subr.bf16.mxu0 0
        %1435 = vmatpush1.bf16.msra.mxu0 0
        %1436 = vmatprep.subr.bf16.mxu0 0
        %1437 = vmatpush1.bf16.msra.mxu0 0
        %1438 = vmatprep.subr.bf16.mxu0 0
        %1439 = vmatpush1.bf16.msra.mxu0 0
        %1440 = vmatprep.subr.bf16.mxu0 0
        %1441 = vmatpush1.bf16.msra.mxu0 0
        %1442 = vmatprep.subr.bf16.mxu0 0
        %1443 = vmatpush1.bf16.msra.mxu0 0
        %1444 = vmatprep.subr.bf16.mxu0 0
        %1445 = vmatpush1.bf16.msra.mxu0 0
        %1446 = vmatprep.subr.bf16.mxu0 0
        %1447 = vmatpush1.bf16.msra.mxu0 0
        %1448 = vmatprep.subr.bf16.mxu0 0
        %1449 = vmatpush1.bf16.msra.mxu0 0
        %1450 = vmatprep.subr.bf16.mxu0 0
        %1451 = vmatpush1.bf16.msra.mxu0 0
        %1452 = vmatprep.mubr.bf16.mxu0 0
        %1453 = vmatmul.mubr.bf16.gmra.mrb[0].mxu0 %v1412
        %v1454 = vpop.f32.mrb[0].mxu0
        %v1455 = vadd.f32 0.0, %v1454
        %v1456 = vpop.f32.mrb[0].mxu0
        %v1457 = vadd.f32 0.0, %v1456
        %v1458 = vpop.f32.mrb[0].mxu0
        %v1459 = vpop.f32.mrb[0].mxu0
        %1460 = vdwg.mxu0
        %v1461 = vadd.f32 %v1397, %v1455
        %v1462 = vadd.f32 %v1398, %v1457
        %1463 = vrot.lane.b32.xlu0 %v960, 111
        %v1464 = vpop.permute.xlu0 %1463
        %1465 = vrot.lane.b32.xlu0 %v961, 111
        %v1466 = vpop.permute.xlu0 %1465
        %v1467 = vsel %vm878, %v1464, %v1466
        %v1468 = vsel %vm878, %v1466, %v1464
        %v1469 = vmul.f32 %v1467, %v887
        %v1470 = vmul.f32 %v1468, %v891
        %s1471 = scalar_lea.vmem %s3, 16
        %v1472 = vld [vmem:[%s1471] sm:$0x3]
        %v1473 = vpack.c.bf16 %v1469, %v1469
        %v1474 = vpack.c.bf16 %v1470, %v1470
        %v1476 = vsel %vm307, %v1472, 0
        %v1479 = vsel %vm311, %v1473, 0
        %v1482 = vsel %vm311, %v1474, 0
        %1484 = vmatprep.subr.bf16.mxu0 %v1482
        %1485 = vmatpush1.bf16.msra.mxu0 %v1479
        %1486 = vmatprep.subr.bf16.mxu0 0
        %1487 = vmatpush1.bf16.msra.mxu0 0
        %1488 = vmatprep.subr.bf16.mxu0 0
        %1489 = vmatpush1.bf16.msra.mxu0 0
        %1490 = vmatprep.subr.bf16.mxu0 0
        %1491 = vmatpush1.bf16.msra.mxu0 0
        %1492 = vmatprep.subr.bf16.mxu0 0
        %1493 = vmatpush1.bf16.msra.mxu0 0
        %1494 = vmatprep.subr.bf16.mxu0 0
        %1495 = vmatpush1.bf16.msra.mxu0 0
        %1496 = vmatprep.subr.bf16.mxu0 0
        %1497 = vmatpush1.bf16.msra.mxu0 0
        %1498 = vmatprep.subr.bf16.mxu0 0
        %1499 = vmatpush1.bf16.msra.mxu0 0
        %1500 = vmatprep.subr.bf16.mxu0 0
        %1501 = vmatpush1.bf16.msra.mxu0 0
        %1502 = vmatprep.subr.bf16.mxu0 0
        %1503 = vmatpush1.bf16.msra.mxu0 0
        %1504 = vmatprep.subr.bf16.mxu0 0
        %1505 = vmatpush1.bf16.msra.mxu0 0
        %1506 = vmatprep.subr.bf16.mxu0 0
        %1507 = vmatpush1.bf16.msra.mxu0 0
        %1508 = vmatprep.subr.bf16.mxu0 0
        %1509 = vmatpush1.bf16.msra.mxu0 0
        %1510 = vmatprep.subr.bf16.mxu0 0
        %1511 = vmatpush1.bf16.msra.mxu0 0
        %1512 = vmatprep.subr.bf16.mxu0 0
        %1513 = vmatpush1.bf16.msra.mxu0 0
        %1514 = vmatprep.subr.bf16.mxu0 0
        %1515 = vmatpush1.bf16.msra.mxu0 0
        %1516 = vmatprep.mubr.bf16.mxu0 0
        %1517 = vmatmul.mubr.bf16.gmra.mrb[0].mxu0 %v1476
        %v1518 = vpop.f32.mrb[0].mxu0
        %v1519 = vadd.f32 0.0, %v1518
        %v1520 = vpop.f32.mrb[0].mxu0
        %v1521 = vadd.f32 0.0, %v1520
        %v1522 = vpop.f32.mrb[0].mxu0
        %v1523 = vpop.f32.mrb[0].mxu0
        %1524 = vdwg.mxu0
        %v1525 = vadd.f32 %v1461, %v1519
        %v1526 = vadd.f32 %v1462, %v1521
        %v1527 = vld [vmem:[%s4] sm:$0xf]
        %1529 = vset.pattern.permute.xlu0 0
        %1530 = vperm.xlu0 %1529, %v1527
        %v1531 = vpop.permute.xlu0 %1530
        %v1533 = vadd.f32 %v1525, %v1531
        %v1534 = vadd.f32 %v1526, %v1531
        %v1537 = vcombine.low %v1533, %v1534
        %v1539 = vadd.f32 %v251, %v1537
        %v1540 = vmax.f32 %v1539, 0.0
        %1541 = vst [vmem:[%s244] sm:$0xff] %v1540
        %s1542 = sand.u32 %s159, 1
        %s1543 = scalar_lea.sflag [#allocation3], %s1542
        %s1544 = sand.u32 %s159, 1
        %s1545 = smul.addr %s1544, 8
        %s1546 = scalar_lea.vmem [#allocation2], %s1545
        // Predicated region
        $region45: #{tpu_custom_call.1} parent=43 // pred_check
          %p1547 = pneg %p169
        $region46: #{tpu_custom_call.1} parent=43 // pred_check_branch
          %1549 = sbr.rel (%p1547) target = $region48
        $region47: #{tpu_custom_call.1} parent=43 // pred_region
          %s1551 = ssub.s32 128, 128
          %1552 = vsyncadd %s1543, %s1551
          %s1553 = smul.addr %s20, 2
          %s1554 = smul.addr %s1553, 64
          %s1555 = scalar_lea.hbm %s6, %s1554
          %s1557 = sshll.u32 %s1546, 4
          %s1558 = int_to_ptr.vmem [resolvable:$true] %s1557
          %1560 = dma.vmem_to_hbm [thread:$0]  %s1558, 128, %s1555, %s1543
        $region48: #{tpu_custom_call.1} parent=43 // pred_fallthru
          _
      $region44: #{tpu_custom_call.1} parent=5 // pred_fallthru
        _
      %p1561 = scmp.le.s32.totalorder 2, %s15
      // Predicated region
      $region49: #{tpu_custom_call.1} parent=5 // pred_check
        %p1562 = pneg %p1561
      $region50: #{tpu_custom_call.1} parent=5 // pred_check_branch
        %1564 = sbr.rel (%p1562) target = $region52
      $region51: #{tpu_custom_call.1} parent=5 // pred_region
        %s1565 = ssub.s32 %s15, 2
        // Predicated region
        $region53: #{tpu_custom_call.1} parent=51 // pred_check
          %p1566 = pneg %p175
        $region54: #{tpu_custom_call.1} parent=51 // pred_check_branch
          %1568 = sbr.rel (%p1566) target = $region56
        $region55: #{tpu_custom_call.1} parent=51 // pred_region
          %s1569 = sand.u32 %s160, 1
          %s1570 = scalar_lea.sflag [#allocation3], %s1569
          %s1571 = sand.u32 %s160, 1
          %s1572 = smul.addr %s1571, 8
          %s1573 = scalar_lea.vmem [#allocation2], %s1572
          %1574 = dma.done %s1570, 128
        $region56: #{tpu_custom_call.1} parent=51 // pred_fallthru
          _
      $region52: #{tpu_custom_call.1} parent=5 // pred_fallthru
        _
    $region6: #{tpu_custom_call.1} parent=1 // loop_footer
      %s19 = sadd.s32 1, %s15
    $region7: #{tpu_custom_call.1} parent=1 // loop_footer_branch
      %14 = sbr.rel target = $region3
    $region8: #{tpu_custom_call.1} parent=1 // loop_exit
      _
    %1575 = vsyncpa [#allocation3], 1
    %s1576 = scalar_lea.sflag [#allocation3], 1
    %1577 = vsyncpa %s1576, 1

</llo_original>
